<compile_context>
chip_gen: v7x
topology: tpu7x:2x2x1
jax: 0.10.0
libtpu: 0.0.40
codegen_flags: <defaults>
</compile_context>

<pallas_src>
import math

import jax
import jax.numpy as jnp
import numpy as np
from jax.experimental import pallas as pl
from jax.experimental.pallas import tpu as pltpu


# ----------------------------------------------------------------------------
# Pallas kernel: whole MLP forward for one batch tile, feature-major layout.
# h has shape (features, tile_n).  Per layer:  h = sin(W^T @ h + b)
# (no sine on the last layer).  Layer 0 fuses concat(x, z):
#   h0 = Wx^T @ x^T + Wz^T @ z^T + b0
# Weights are already Lipschitz-normalized and w0-folded by the wrapper.
# ----------------------------------------------------------------------------
def _make_mlp_kernel(num_layers, apply_sine):
    def kernel(x_ref, z_ref, *refs):
        o_ref = refs[-1]
        p = refs[:-1]                       # (wx, wz, b0, w1, b1, w2, b2, ...)
        wx_ref, wz_ref, b0_ref = p[0], p[1], p[2]
        h = (jnp.dot(wx_ref[...], x_ref[...], preferred_element_type=jnp.float32)
             + jnp.dot(wz_ref[...], z_ref[...], preferred_element_type=jnp.float32)
             + b0_ref[...])
        if apply_sine[0]:
            h = jnp.sin(h)
        for li in range(1, num_layers):
            w_ref = p[3 + 2 * (li - 1)]
            b_ref = p[4 + 2 * (li - 1)]
            h = jnp.dot(w_ref[...], h, preferred_element_type=jnp.float32) + b_ref[...]
            if apply_sine[li]:
                h = jnp.sin(h)
        o_ref[...] = h.astype(o_ref.dtype)
    return kernel


# ----------------------------------------------------------------------------
# Grid-invariant preprocessing (once per call, outside the kernel):
# Lipschitz normalization, conditional-column mask blend, w0 folding, transpose
# to feature-major, and split of layer-0 weights into (Wx, Wz) for fused concat.
# ----------------------------------------------------------------------------
def _effective_params_T(params, w0s, apply_sine, x_dim):
    eff = []
    for li, p in enumerate(params):
        lipc = jax.nn.softplus(p["c"][0, 0])
        absrowsum = jnp.sum(jnp.abs(p["w"]) * p["mask"], axis=0, keepdims=True)
        scale = jnp.minimum(lipc / absrowsum, 1.0)
        w_eff = p["w"] * (p["mask"] * scale + (1.0 - p["mask"]))
        b_eff = p["b"]
        if apply_sine[li]:                        # fold w0 into W and b
            w_eff = w0s[li] * w_eff
            b_eff = w0s[li] * b_eff
        w_t = jnp.transpose(w_eff).astype(jnp.float32)   # (dout, din)
        b_t = jnp.transpose(b_eff).astype(jnp.float32)   # (dout, 1)
        if li == 0:
            eff.append((w_t[:, :x_dim], w_t[:, x_dim:], b_t))
        else:
            eff.append((w_t, b_t))
    return eff


def _pick_tile_n(n, max_tile=4096, min_tile=128, target_steps=4):
    # Lane-multiple tile, large enough to amortize per-step overhead, while
    # keeping >= target_steps grid steps (>= 2 per TensorCore on v7x).
    t = -(-n // target_steps)                 # cdiv
    t = ((t + 127) // 128) * 128              # round up to lane multiple
    return max(min_tile, min(max_tile, t))


# ----------------------------------------------------------------------------
# Wrapper: transpose x/z to feature-major, pad the batch up to the grid, run
# the fused kernel over batch tiles, transpose back.
# ----------------------------------------------------------------------------
def cond_lip_siren_forward(x, z, params, w0s, apply_sine, *, tile_n=None):
    n, x_dim = x.shape
    nz = z.shape[1]
    num_layers = len(params)
    dout = params[-1]["w"].shape[1]

    if tile_n is None:
        tile_n = _pick_tile_n(n)
    n_pad = ((n + tile_n - 1) // tile_n) * tile_n
    grid = (n_pad // tile_n,)

    # Feature-major inputs (batch on the lane axis).  Padded columns compute
    # garbage that is sliced off after the call.
    x_t = jnp.transpose(x.astype(jnp.float32))        # (x_dim, n)
    z_t = jnp.transpose(z.astype(jnp.float32))        # (nz, n)
    if n_pad != n:
        x_t = jnp.pad(x_t, ((0, 0), (0, n_pad - n)))
        z_t = jnp.pad(z_t, ((0, 0), (0, n_pad - n)))

    eff = _effective_params_T(params, tuple(w0s), tuple(apply_sine), x_dim)
    kernel = _make_mlp_kernel(num_layers, tuple(apply_sine))

    in_specs = [
        pl.BlockSpec((x_dim, tile_n), lambda i: (0, i)),
        pl.BlockSpec((nz, tile_n), lambda i: (0, i)),
    ]
    flat_args = [x_t, z_t]
    for tensors in eff:
        for t in tensors:
            in_specs.append(pl.BlockSpec(t.shape, lambda i: (0, 0)))
            flat_args.append(t)

    out_t = pl.pallas_call(
        kernel,
        out_shape=jax.ShapeDtypeStruct((dout, n_pad), jnp.float32),
        grid=grid,
        in_specs=in_specs,
        out_specs=pl.BlockSpec((dout, tile_n), lambda i: (0, i)),
        compiler_params=pltpu.CompilerParams(
            dimension_semantics=("parallel",),
        ),
    )(*flat_args)
    return jnp.transpose(out_t[:, :n])


# ----------------------------------------------------------------------------
# Deterministic parameter init (siren_uniform_: U(-sqrt(6/fan_in), sqrt(6/fan_in)))
# ----------------------------------------------------------------------------
def init_params(layers, nz, key):
    params = []
    for li in range(len(layers) - 1):
        din, dout = layers[li], layers[li + 1]
        key, kw, kb = jax.random.split(key, 3)
        bound = math.sqrt(6.0 / din)
        w = jax.random.uniform(kw, (din, dout), jnp.float32, -bound, bound)
        b_bound = 1.0 / math.sqrt(din)
        b = jax.random.uniform(kb, (1, dout), jnp.float32, -b_bound, b_bound)
        # Lipschitz parameter c initialized to max abs column-sum (standard init).
        c = jnp.max(jnp.sum(jnp.abs(w), axis=0)).reshape(1, 1).astype(jnp.float32)
        mask = jnp.ones((din, 1), jnp.float32)
        if li == 0:
            # ConditionalLipschitzLinear: last nz inputs (latent z) excluded
            # from the Lipschitz normalization.
            mask = mask.at[din - nz:, 0].set(0.0)
        params.append(dict(w=w, b=b, c=c, mask=mask))
    return params


def reference_forward_np(x, z, params, w0s, apply_sine):
    """Float64 NumPy ground truth mirroring the PyTorch module's forward."""
    h = np.concatenate(
        [np.asarray(x, np.float64), np.asarray(z, np.float64)], axis=-1)
    for li, p in enumerate(params):
        w = np.asarray(p["w"], np.float64)
        b = np.asarray(p["b"], np.float64)
        mask = np.asarray(p["mask"], np.float64)
        c = float(np.asarray(p["c"], np.float64)[0, 0])
        lipc = np.logaddexp(0.0, c)                 # softplus
        absrowsum = np.sum(np.abs(w) * mask, axis=0, keepdims=True)
        scale = np.minimum(lipc / absrowsum, 1.0)
        w_eff = w * (mask * scale + (1.0 - mask))
        h = h @ w_eff + b
        if apply_sine[li]:
            h = np.sin(w0s[li] * h)
    return h


if __name__ == "__main__":
    # Model config: layers = [x_dim + nz, hidden, hidden, hidden, out_dim]
    nz = 4
    x_dim = 4
    layers = [x_dim + nz, 32, 32, 32, 3]
    w0, w0_initial = 1.0, 30.0
    num_linear = len(layers) - 1
    w0s = [w0_initial] + [w0] * (num_linear - 2) + [0.0]   # last entry unused
    apply_sine = [True] * (num_linear - 1) + [False]

    key = jax.random.PRNGKey(0)
    kp, kx, kz = jax.random.split(key, 3)
    params = init_params(layers, nz, kp)
    # Shrink c so the Lipschitz clamp (scale < 1) is actually active and the
    # mask/normalization path is exercised by the test (at the standard init
    # softplus(c) >= every column sum, so scale == 1 everywhere).
    params = [dict(p, c=p["c"] * 0.6) for p in params]

    n = 256
    x = jax.random.uniform(kx, (n, x_dim), jnp.float32, -1.0, 1.0)
    z = jax.random.normal(kz, (n, nz), jnp.float32)

    out = cond_lip_siren_forward(x, z, params, w0s, apply_sine)   # tile 128 -> 2 steps
    out = jax.block_until_ready(out)

    ref = reference_forward_np(x, z, params, w0s, apply_sine)
    assert out.shape == (n, layers[-1])
    err = float(np.max(np.abs(np.asarray(out, np.float64) - ref)))
    # f32 MXU matmuls + sin vs float64 reference; w0=30 first layer amplifies
    # rounding, so expect ~1e-4; semantic bugs would be O(0.1+).
    assert err < 2e-3, f"mismatch vs float64 reference (max abs err {err:.3e})"

    print("KERNEL_OK")
</pallas_src>

<mosaic_0001>
module attributes {stable_mosaic.version = 11 : i64} {
  func.func @kernel(%arg0: i32, %arg1: memref<4x128xf32, #tpu.memory_space<vmem>>, %arg2: memref<4x128xf32, #tpu.memory_space<vmem>>, %arg3: memref<32x4xf32, #tpu.memory_space<vmem>>, %arg4: memref<32x4xf32, #tpu.memory_space<vmem>>, %arg5: memref<32x1xf32, #tpu.memory_space<vmem>>, %arg6: memref<32x32xf32, #tpu.memory_space<vmem>>, %arg7: memref<32x1xf32, #tpu.memory_space<vmem>>, %arg8: memref<32x32xf32, #tpu.memory_space<vmem>>, %arg9: memref<32x1xf32, #tpu.memory_space<vmem>>, %arg10: memref<3x32xf32, #tpu.memory_space<vmem>>, %arg11: memref<3x1xf32, #tpu.memory_space<vmem>>, %arg12: memref<3x128xf32, #tpu.memory_space<vmem>>) attributes {dimension_semantics = [#tpu.dimension_semantics<parallel>], iteration_bounds = array<i64: 2>, scalar_prefetch = 0 : i64, scratch_operands = 0 : i64, tpu.core_type = #tpu.core_type<tc>, window_params = [{transform_indices = @transform_0, window_bounds = array<i64: 4, 128>}, {transform_indices = @transform_1, window_bounds = array<i64: 4, 128>}, {pipeline_mode = #tpu.pipeline_mode<synchronous>, transform_indices = @transform_2, window_bounds = array<i64: 32, 4>}, {pipeline_mode = #tpu.pipeline_mode<synchronous>, transform_indices = @transform_3, window_bounds = array<i64: 32, 4>}, {pipeline_mode = #tpu.pipeline_mode<synchronous>, transform_indices = @transform_4, window_bounds = array<i64: 32, 1>}, {pipeline_mode = #tpu.pipeline_mode<synchronous>, transform_indices = @transform_5, window_bounds = array<i64: 32, 32>}, {pipeline_mode = #tpu.pipeline_mode<synchronous>, transform_indices = @transform_6, window_bounds = array<i64: 32, 1>}, {pipeline_mode = #tpu.pipeline_mode<synchronous>, transform_indices = @transform_7, window_bounds = array<i64: 32, 32>}, {pipeline_mode = #tpu.pipeline_mode<synchronous>, transform_indices = @transform_8, window_bounds = array<i64: 32, 1>}, {pipeline_mode = #tpu.pipeline_mode<synchronous>, transform_indices = @transform_9, window_bounds = array<i64: 3, 32>}, {pipeline_mode = #tpu.pipeline_mode<synchronous>, transform_indices = @transform_10, window_bounds = array<i64: 3, 1>}, {transform_indices = @transform_11, window_bounds = array<i64: 3, 128>}]} {
    %c0 = arith.constant 0 : index
    %c0_0 = arith.constant 0 : index
    %0 = vector.load %arg3[%c0, %c0_0] : memref<32x4xf32, #tpu.memory_space<vmem>>, vector<32x4xf32>
    %c0_1 = arith.constant 0 : index
    %c0_2 = arith.constant 0 : index
    %1 = vector.load %arg1[%c0_1, %c0_2] : memref<4x128xf32, #tpu.memory_space<vmem>>, vector<4x128xf32>
    %cst = arith.constant dense<0.000000e+00> : vector<32x128xf32>
    %2 = tpu.matmul %0, %1, %cst {dimension_numbers = #tpu.dot_dimension_numbers<[1], [0], [0], [1], [0, 0, 1, 1], [], []>} : vector<32x4xf32>, vector<4x128xf32>, vector<32x128xf32> -> vector<32x128xf32>
    %c0_3 = arith.constant 0 : index
    %c0_4 = arith.constant 0 : index
    %3 = vector.load %arg4[%c0_3, %c0_4] : memref<32x4xf32, #tpu.memory_space<vmem>>, vector<32x4xf32>
    %c0_5 = arith.constant 0 : index
    %c0_6 = arith.constant 0 : index
    %4 = vector.load %arg2[%c0_5, %c0_6] : memref<4x128xf32, #tpu.memory_space<vmem>>, vector<4x128xf32>
    %cst_7 = arith.constant dense<0.000000e+00> : vector<32x128xf32>
    %5 = tpu.matmul %3, %4, %cst_7 {dimension_numbers = #tpu.dot_dimension_numbers<[1], [0], [0], [1], [0, 0, 1, 1], [], []>} : vector<32x4xf32>, vector<4x128xf32>, vector<32x128xf32> -> vector<32x128xf32>
    %6 = arith.addf %2, %5 : vector<32x128xf32>
    %c0_8 = arith.constant 0 : index
    %c0_9 = arith.constant 0 : index
    %7 = vector.load %arg5[%c0_8, %c0_9] : memref<32x1xf32, #tpu.memory_space<vmem>>, vector<32x1xf32>
    %8 = vector.broadcast %7 : vector<32x1xf32> to vector<32x128xf32>
    %9 = arith.addf %6, %8 : vector<32x128xf32>
    %10 = math.sin %9 : vector<32x128xf32>
    %c0_10 = arith.constant 0 : index
    %c0_11 = arith.constant 0 : index
    %11 = vector.load %arg6[%c0_10, %c0_11] : memref<32x32xf32, #tpu.memory_space<vmem>>, vector<32x32xf32>
    %cst_12 = arith.constant dense<0.000000e+00> : vector<32x128xf32>
    %12 = tpu.matmul %11, %10, %cst_12 {dimension_numbers = #tpu.dot_dimension_numbers<[1], [0], [0], [1], [0, 0, 1, 1], [], []>} : vector<32x32xf32>, vector<32x128xf32>, vector<32x128xf32> -> vector<32x128xf32>
    %c0_13 = arith.constant 0 : index
    %c0_14 = arith.constant 0 : index
    %13 = vector.load %arg7[%c0_13, %c0_14] : memref<32x1xf32, #tpu.memory_space<vmem>>, vector<32x1xf32>
    %14 = vector.broadcast %13 : vector<32x1xf32> to vector<32x128xf32>
    %15 = arith.addf %12, %14 : vector<32x128xf32>
    %16 = math.sin %15 : vector<32x128xf32>
    %c0_15 = arith.constant 0 : index
    %c0_16 = arith.constant 0 : index
    %17 = vector.load %arg8[%c0_15, %c0_16] : memref<32x32xf32, #tpu.memory_space<vmem>>, vector<32x32xf32>
    %cst_17 = arith.constant dense<0.000000e+00> : vector<32x128xf32>
    %18 = tpu.matmul %17, %16, %cst_17 {dimension_numbers = #tpu.dot_dimension_numbers<[1], [0], [0], [1], [0, 0, 1, 1], [], []>} : vector<32x32xf32>, vector<32x128xf32>, vector<32x128xf32> -> vector<32x128xf32>
    %c0_18 = arith.constant 0 : index
    %c0_19 = arith.constant 0 : index
    %19 = vector.load %arg9[%c0_18, %c0_19] : memref<32x1xf32, #tpu.memory_space<vmem>>, vector<32x1xf32>
    %20 = vector.broadcast %19 : vector<32x1xf32> to vector<32x128xf32>
    %21 = arith.addf %18, %20 : vector<32x128xf32>
    %22 = math.sin %21 : vector<32x128xf32>
    %c0_20 = arith.constant 0 : index
    %c0_21 = arith.constant 0 : index
    %23 = vector.load %arg10[%c0_20, %c0_21] : memref<3x32xf32, #tpu.memory_space<vmem>>, vector<3x32xf32>
    %cst_22 = arith.constant dense<0.000000e+00> : vector<3x128xf32>
    %24 = tpu.matmul %23, %22, %cst_22 {dimension_numbers = #tpu.dot_dimension_numbers<[1], [0], [0], [1], [0, 0, 1, 1], [], []>} : vector<3x32xf32>, vector<32x128xf32>, vector<3x128xf32> -> vector<3x128xf32>
    %c0_23 = arith.constant 0 : index
    %c0_24 = arith.constant 0 : index
    %25 = vector.load %arg11[%c0_23, %c0_24] : memref<3x1xf32, #tpu.memory_space<vmem>>, vector<3x1xf32>
    %26 = vector.broadcast %25 : vector<3x1xf32> to vector<3x128xf32>
    %27 = arith.addf %24, %26 : vector<3x128xf32>
    %c0_25 = arith.constant 0 : index
    %c0_26 = arith.constant 0 : index
    %28 = vector.load %arg12[%c0_25, %c0_26] : memref<3x128xf32, #tpu.memory_space<vmem>>, vector<3x128xf32>
    tpu.vector_store %arg12[%c0_25, %c0_26], %27 {strides = array<i32>} : memref<3x128xf32, #tpu.memory_space<vmem>>, vector<3x128xf32>,
    return
  }
  func.func @transform_0(%arg0: i32) -> (i32, i32) {
    %c0_i32 = arith.constant 0 : i32
    %c0_i32_0 = arith.constant 0 : i32
    return %c0_i32, %arg0 : i32, i32
  }
  func.func @transform_1(%arg0: i32) -> (i32, i32) {
    %c0_i32 = arith.constant 0 : i32
    %c0_i32_0 = arith.constant 0 : i32
    return %c0_i32, %arg0 : i32, i32
  }
  func.func @transform_2(%arg0: i32) -> (i32, i32) {
    %c0_i32 = arith.constant 0 : i32
    %c0_i32_0 = arith.constant 0 : i32
    %c0_i32_1 = arith.constant 0 : i32
    return %c0_i32, %c0_i32_0 : i32, i32
  }
  func.func @transform_3(%arg0: i32) -> (i32, i32) {
    %c0_i32 = arith.constant 0 : i32
    %c0_i32_0 = arith.constant 0 : i32
    %c0_i32_1 = arith.constant 0 : i32
    return %c0_i32, %c0_i32_0 : i32, i32
  }
  func.func @transform_4(%arg0: i32) -> (i32, i32) {
    %c0_i32 = arith.constant 0 : i32
    %c0_i32_0 = arith.constant 0 : i32
    %c0_i32_1 = arith.constant 0 : i32
    return %c0_i32, %c0_i32_0 : i32, i32
  }
  func.func @transform_5(%arg0: i32) -> (i32, i32) {
    %c0_i32 = arith.constant 0 : i32
    %c0_i32_0 = arith.constant 0 : i32
    %c0_i32_1 = arith.constant 0 : i32
    return %c0_i32, %c0_i32_0 : i32, i32
  }
  func.func @transform_6(%arg0: i32) -> (i32, i32) {
    %c0_i32 = arith.constant 0 : i32
    %c0_i32_0 = arith.constant 0 : i32
    %c0_i32_1 = arith.constant 0 : i32
    return %c0_i32, %c0_i32_0 : i32, i32
  }
  func.func @transform_7(%arg0: i32) -> (i32, i32) {
    %c0_i32 = arith.constant 0 : i32
    %c0_i32_0 = arith.constant 0 : i32
    %c0_i32_1 = arith.constant 0 : i32
    return %c0_i32, %c0_i32_0 : i32, i32
  }
  func.func @transform_8(%arg0: i32) -> (i32, i32) {
    %c0_i32 = arith.constant 0 : i32
    %c0_i32_0 = arith.constant 0 : i32
    %c0_i32_1 = arith.constant 0 : i32
    return %c0_i32, %c0_i32_0 : i32, i32
  }
  func.func @transform_9(%arg0: i32) -> (i32, i32) {
    %c0_i32 = arith.constant 0 : i32
    %c0_i32_0 = arith.constant 0 : i32
    %c0_i32_1 = arith.constant 0 : i32
    return %c0_i32, %c0_i32_0 : i32, i32
  }
  func.func @transform_10(%arg0: i32) -> (i32, i32) {
    %c0_i32 = arith.constant 0 : i32
    %c0_i32_0 = arith.constant 0 : i32
    %c0_i32_1 = arith.constant 0 : i32
    return %c0_i32, %c0_i32_0 : i32, i32
  }
  func.func @transform_11(%arg0: i32) -> (i32, i32) {
    %c0_i32 = arith.constant 0 : i32
    %c0_i32_0 = arith.constant 0 : i32
    return %c0_i32, %arg0 : i32, i32
  }
}

</mosaic_0001>

<llo_original>
// kernel: tpu_custom_call.1
$region0: #{tpu_custom_call.1}
  #allocation0 [shape = 'u32[]', space=smem, size = 0x4, offset = 0x4, fixed_abs, tag = 'smem constant byte address 0x4 - core index']
  #allocation1 [shape = 'u32[144,128]{1,0:T(1,128)}', space=vmem, size = 0x12000, scoped, tag = 'internal scratch']
  %s0 = inlined_call_operand.vmem [shape: f32[4,256], index: 0, kind: input, shape index: {}]
  %s1 = inlined_call_operand.vmem [shape: f32[4,256], index: 1, kind: input, shape index: {}]
  %s2 = inlined_call_operand.vmem [shape: f32[32,4], index: 2, kind: input, shape index: {}]
  %s3 = inlined_call_operand.vmem [shape: f32[32,4], index: 3, kind: input, shape index: {}]
  %s4 = inlined_call_operand.vmem [shape: f32[32,1], index: 4, kind: input, shape index: {}]
  %s5 = inlined_call_operand.vmem [shape: f32[32,32], index: 5, kind: input, shape index: {}]
  %s6 = inlined_call_operand.vmem [shape: f32[32,1], index: 6, kind: input, shape index: {}]
  %s7 = inlined_call_operand.vmem [shape: f32[32,32], index: 7, kind: input, shape index: {}]
  %s8 = inlined_call_operand.vmem [shape: f32[32,1], index: 8, kind: input, shape index: {}]
  %s9 = inlined_call_operand.vmem [shape: f32[3,32], index: 9, kind: input, shape index: {}]
  %s10 = inlined_call_operand.vmem [shape: f32[3,1], index: 10, kind: input, shape index: {}]
  %s11 = inlined_call_operand.hbm [shape: f32[3,256], index: 11, kind: output, shape index: {}]
  %s12 = sld [smem:[#allocation0]]
  $region77: #{tpu_custom_call.1} parent=0
    _
  %s14 = ssub.s32 1, %s12
  %s15 = scalar_select 0, %s14, %s12
  $region1: #{tpu_custom_call.1} parent=0
    #allocation2 [shape = 'u8[4096]{0}', space=vmem, size = 0x1000, scoped, tag = 'output window, operand 0']
    #allocation3 [shape = 's32[2]{0}', space=sflag, size = 0x8, scoped, tag = 'scoped memory for tpu_custom_call.1']
    %16 = vsyncpa [#allocation3], 0
    %s17 = scalar_lea.sflag [#allocation3], 1
    %18 = vsyncpa %s17, 0
    loop: start=0, step=1, limit=4
    $region2: #{tpu_custom_call.1} parent=1 // loop_pre_header
      _
    $region3: #{tpu_custom_call.1} parent=1 // loop_header
      %s20 = sphi 0, %s24
      %p21 = scmp.ge.s32.totalorder %s20, 4
      %s30 = sphi 0, %s32
      %s33 = sphi 0, %s30
      %s34 = sphi 0, %s33
      %s50 = sphi 0, %s34
      %s56 = sphi 0, %s58
      %s59 = sphi 0, %s56
      %s60 = sphi 0, %s59
      %s76 = sphi 0, %s60
      %s80 = sphi 0, %s80
      %s82 = sphi 0, %s80
      %s83 = sphi 0, %s82
      %s97 = sphi 0, %s83
      %s101 = sphi 0, %s101
      %s103 = sphi 0, %s101
      %s104 = sphi 0, %s103
      %s118 = sphi 0, %s104
      %s122 = sphi 0, %s122
      %s124 = sphi 0, %s122
      %s125 = sphi 0, %s124
      %s139 = sphi 0, %s125
      %s143 = sphi 0, %s143
      %s145 = sphi 0, %s143
      %s146 = sphi 0, %s145
      %s160 = sphi 0, %s146
      %s164 = sphi 0, %s164
      %s166 = sphi 0, %s164
      %s167 = sphi 0, %s166
      %s181 = sphi 0, %s167
      %s185 = sphi 0, %s185
      %s187 = sphi 0, %s185
      %s188 = sphi 0, %s187
      %s202 = sphi 0, %s188
      %s206 = sphi 0, %s206
      %s208 = sphi 0, %s206
      %s209 = sphi 0, %s208
      %s223 = sphi 0, %s209
      %s227 = sphi 0, %s227
      %s229 = sphi 0, %s227
      %s230 = sphi 0, %s229
      %s244 = sphi 0, %s230
      %s248 = sphi 0, %s248
      %s250 = sphi 0, %s248
      %s251 = sphi 0, %s250
      %s265 = sphi 0, %s251
      %s271 = sphi 0, %s273
      %s274 = sphi 0, %s271
      %s275 = sphi 0, %s274
      %s291 = sphi 0, %s275
    $region4: #{tpu_custom_call.1} parent=1 // loop_header_branch
      %23 = sbr.rel (%p21) target = $region8
    $region5: #{tpu_custom_call.1} parent=1 // loop_body
      %s25 = ssub.s32 %s20, 1
      %s26 = ssub.s32 %s20, 2
      %s27 = sadd.s32 %s20, 1
      %s28 = ssub.s32 %s20, %s27
      %p29 = scmp.eq.s32.totalorder %s28, 0
      %s31 = sadd.s32 %s30, 1
      %s32 = scalar_select %p29, %s30, %s31
      %p35 = pneg %p29
      %p36 = scmp.eq.s32.totalorder %s20, 1
      %p37 = por %p35, %p36
      %p38 = scmp.ne.s32.totalorder %s30, %s33
      %p39 = scmp.eq.s32.totalorder %s20, 0
      %p40 = por %p38, %p39
      %p41 = scmp.ne.s32.totalorder %s30, %s33
      %p42 = scmp.eq.s32.totalorder %s25, 1
      %p43 = por %p41, %p42
      %p44 = scmp.ne.s32.totalorder %s33, %s34
      %p45 = scmp.eq.s32.totalorder %s25, 0
      %p46 = por %p44, %p45
      %p47 = scmp.ne.s32.totalorder %s33, %s34
      %p48 = scmp.eq.s32.totalorder %s26, 1
      %p49 = por %p47, %p48
      %p51 = scmp.ne.s32.totalorder %s34, %s50
      %p52 = scmp.eq.s32.totalorder %s26, 0
      %p53 = por %p51, %p52
      %s54 = ssub.s32 %s20, %s27
      %p55 = scmp.eq.s32.totalorder %s54, 0
      %s57 = sadd.s32 %s56, 1
      %s58 = scalar_select %p55, %s56, %s57
      %p61 = pneg %p55
      %p62 = scmp.eq.s32.totalorder %s20, 1
      %p63 = por %p61, %p62
      %p64 = scmp.ne.s32.totalorder %s56, %s59
      %p65 = scmp.eq.s32.totalorder %s20, 0
      %p66 = por %p64, %p65
      %p67 = scmp.ne.s32.totalorder %s56, %s59
      %p68 = scmp.eq.s32.totalorder %s25, 1
      %p69 = por %p67, %p68
      %p70 = scmp.ne.s32.totalorder %s59, %s60
      %p71 = scmp.eq.s32.totalorder %s25, 0
      %p72 = por %p70, %p71
      %p73 = scmp.ne.s32.totalorder %s59, %s60
      %p74 = scmp.eq.s32.totalorder %s26, 1
      %p75 = por %p73, %p74
      %p77 = scmp.ne.s32.totalorder %s60, %s76
      %p78 = scmp.eq.s32.totalorder %s26, 0
      %p79 = por %p77, %p78
      %s81 = sadd.s32 %s80, 1
      %p84 = scmp.eq.s32.totalorder %s20, 1
      %p85 = scmp.ne.s32.totalorder %s80, %s82
      %p86 = scmp.eq.s32.totalorder %s20, 0
      %p87 = por %p85, %p86
      %p88 = scmp.ne.s32.totalorder %s80, %s82
      %p89 = scmp.eq.s32.totalorder %s25, 1
      %p90 = por %p88, %p89
      %p91 = scmp.ne.s32.totalorder %s82, %s83
      %p92 = scmp.eq.s32.totalorder %s25, 0
      %p93 = por %p91, %p92
      %p94 = scmp.ne.s32.totalorder %s82, %s83
      %p95 = scmp.eq.s32.totalorder %s26, 1
      %p96 = por %p94, %p95
      %p98 = scmp.ne.s32.totalorder %s83, %s97
      %p99 = scmp.eq.s32.totalorder %s26, 0
      %p100 = por %p98, %p99
      %s102 = sadd.s32 %s101, 1
      %p105 = scmp.eq.s32.totalorder %s20, 1
      %p106 = scmp.ne.s32.totalorder %s101, %s103
      %p107 = scmp.eq.s32.totalorder %s20, 0
      %p108 = por %p106, %p107
      %p109 = scmp.ne.s32.totalorder %s101, %s103
      %p110 = scmp.eq.s32.totalorder %s25, 1
      %p111 = por %p109, %p110
      %p112 = scmp.ne.s32.totalorder %s103, %s104
      %p113 = scmp.eq.s32.totalorder %s25, 0
      %p114 = por %p112, %p113
      %p115 = scmp.ne.s32.totalorder %s103, %s104
      %p116 = scmp.eq.s32.totalorder %s26, 1
      %p117 = por %p115, %p116
      %p119 = scmp.ne.s32.totalorder %s104, %s118
      %p120 = scmp.eq.s32.totalorder %s26, 0
      %p121 = por %p119, %p120
      %s123 = sadd.s32 %s122, 1
      %p126 = scmp.eq.s32.totalorder %s20, 1
      %p127 = scmp.ne.s32.totalorder %s122, %s124
      %p128 = scmp.eq.s32.totalorder %s20, 0
      %p129 = por %p127, %p128
      %p130 = scmp.ne.s32.totalorder %s122, %s124
      %p131 = scmp.eq.s32.totalorder %s25, 1
      %p132 = por %p130, %p131
      %p133 = scmp.ne.s32.totalorder %s124, %s125
      %p134 = scmp.eq.s32.totalorder %s25, 0
      %p135 = por %p133, %p134
      %p136 = scmp.ne.s32.totalorder %s124, %s125
      %p137 = scmp.eq.s32.totalorder %s26, 1
      %p138 = por %p136, %p137
      %p140 = scmp.ne.s32.totalorder %s125, %s139
      %p141 = scmp.eq.s32.totalorder %s26, 0
      %p142 = por %p140, %p141
      %s144 = sadd.s32 %s143, 1
      %p147 = scmp.eq.s32.totalorder %s20, 1
      %p148 = scmp.ne.s32.totalorder %s143, %s145
      %p149 = scmp.eq.s32.totalorder %s20, 0
      %p150 = por %p148, %p149
      %p151 = scmp.ne.s32.totalorder %s143, %s145
      %p152 = scmp.eq.s32.totalorder %s25, 1
      %p153 = por %p151, %p152
      %p154 = scmp.ne.s32.totalorder %s145, %s146
      %p155 = scmp.eq.s32.totalorder %s25, 0
      %p156 = por %p154, %p155
      %p157 = scmp.ne.s32.totalorder %s145, %s146
      %p158 = scmp.eq.s32.totalorder %s26, 1
      %p159 = por %p157, %p158
      %p161 = scmp.ne.s32.totalorder %s146, %s160
      %p162 = scmp.eq.s32.totalorder %s26, 0
      %p163 = por %p161, %p162
      %s165 = sadd.s32 %s164, 1
      %p168 = scmp.eq.s32.totalorder %s20, 1
      %p169 = scmp.ne.s32.totalorder %s164, %s166
      %p170 = scmp.eq.s32.totalorder %s20, 0
      %p171 = por %p169, %p170
      %p172 = scmp.ne.s32.totalorder %s164, %s166
      %p173 = scmp.eq.s32.totalorder %s25, 1
      %p174 = por %p172, %p173
      %p175 = scmp.ne.s32.totalorder %s166, %s167
      %p176 = scmp.eq.s32.totalorder %s25, 0
      %p177 = por %p175, %p176
      %p178 = scmp.ne.s32.totalorder %s166, %s167
      %p179 = scmp.eq.s32.totalorder %s26, 1
      %p180 = por %p178, %p179
      %p182 = scmp.ne.s32.totalorder %s167, %s181
      %p183 = scmp.eq.s32.totalorder %s26, 0
      %p184 = por %p182, %p183
      %s186 = sadd.s32 %s185, 1
      %p189 = scmp.eq.s32.totalorder %s20, 1
      %p190 = scmp.ne.s32.totalorder %s185, %s187
      %p191 = scmp.eq.s32.totalorder %s20, 0
      %p192 = por %p190, %p191
      %p193 = scmp.ne.s32.totalorder %s185, %s187
      %p194 = scmp.eq.s32.totalorder %s25, 1
      %p195 = por %p193, %p194
      %p196 = scmp.ne.s32.totalorder %s187, %s188
      %p197 = scmp.eq.s32.totalorder %s25, 0
      %p198 = por %p196, %p197
      %p199 = scmp.ne.s32.totalorder %s187, %s188
      %p200 = scmp.eq.s32.totalorder %s26, 1
      %p201 = por %p199, %p200
      %p203 = scmp.ne.s32.totalorder %s188, %s202
      %p204 = scmp.eq.s32.totalorder %s26, 0
      %p205 = por %p203, %p204
      %s207 = sadd.s32 %s206, 1
      %p210 = scmp.eq.s32.totalorder %s20, 1
      %p211 = scmp.ne.s32.totalorder %s206, %s208
      %p212 = scmp.eq.s32.totalorder %s20, 0
      %p213 = por %p211, %p212
      %p214 = scmp.ne.s32.totalorder %s206, %s208
      %p215 = scmp.eq.s32.totalorder %s25, 1
      %p216 = por %p214, %p215
      %p217 = scmp.ne.s32.totalorder %s208, %s209
      %p218 = scmp.eq.s32.totalorder %s25, 0
      %p219 = por %p217, %p218
      %p220 = scmp.ne.s32.totalorder %s208, %s209
      %p221 = scmp.eq.s32.totalorder %s26, 1
      %p222 = por %p220, %p221
      %p224 = scmp.ne.s32.totalorder %s209, %s223
      %p225 = scmp.eq.s32.totalorder %s26, 0
      %p226 = por %p224, %p225
      %s228 = sadd.s32 %s227, 1
      %p231 = scmp.eq.s32.totalorder %s20, 1
      %p232 = scmp.ne.s32.totalorder %s227, %s229
      %p233 = scmp.eq.s32.totalorder %s20, 0
      %p234 = por %p232, %p233
      %p235 = scmp.ne.s32.totalorder %s227, %s229
      %p236 = scmp.eq.s32.totalorder %s25, 1
      %p237 = por %p235, %p236
      %p238 = scmp.ne.s32.totalorder %s229, %s230
      %p239 = scmp.eq.s32.totalorder %s25, 0
      %p240 = por %p238, %p239
      %p241 = scmp.ne.s32.totalorder %s229, %s230
      %p242 = scmp.eq.s32.totalorder %s26, 1
      %p243 = por %p241, %p242
      %p245 = scmp.ne.s32.totalorder %s230, %s244
      %p246 = scmp.eq.s32.totalorder %s26, 0
      %p247 = por %p245, %p246
      %s249 = sadd.s32 %s248, 1
      %p252 = scmp.eq.s32.totalorder %s20, 1
      %p253 = scmp.ne.s32.totalorder %s248, %s250
      %p254 = scmp.eq.s32.totalorder %s20, 0
      %p255 = por %p253, %p254
      %p256 = scmp.ne.s32.totalorder %s248, %s250
      %p257 = scmp.eq.s32.totalorder %s25, 1
      %p258 = por %p256, %p257
      %p259 = scmp.ne.s32.totalorder %s250, %s251
      %p260 = scmp.eq.s32.totalorder %s25, 0
      %p261 = por %p259, %p260
      %p262 = scmp.ne.s32.totalorder %s250, %s251
      %p263 = scmp.eq.s32.totalorder %s26, 1
      %p264 = por %p262, %p263
      %p266 = scmp.ne.s32.totalorder %s251, %s265
      %p267 = scmp.eq.s32.totalorder %s26, 0
      %p268 = por %p266, %p267
      %s269 = ssub.s32 %s20, %s27
      %p270 = scmp.eq.s32.totalorder %s269, 0
      %s272 = sadd.s32 %s271, 1
      %s273 = scalar_select %p270, %s271, %s272
      %p276 = pneg %p270
      %p277 = scmp.eq.s32.totalorder %s20, 1
      %p278 = por %p276, %p277
      %p279 = scmp.ne.s32.totalorder %s271, %s274
      %p280 = scmp.eq.s32.totalorder %s20, 0
      %p281 = por %p279, %p280
      %p282 = scmp.ne.s32.totalorder %s271, %s274
      %p283 = scmp.eq.s32.totalorder %s25, 1
      %p284 = por %p282, %p283
      %p285 = scmp.ne.s32.totalorder %s274, %s275
      %p286 = scmp.eq.s32.totalorder %s25, 0
      %p287 = por %p285, %p286
      %p288 = scmp.ne.s32.totalorder %s274, %s275
      %p289 = scmp.eq.s32.totalorder %s26, 1
      %p290 = por %p288, %p289
      %p292 = scmp.ne.s32.totalorder %s275, %s291
      %p293 = scmp.eq.s32.totalorder %s26, 0
      %p294 = por %p292, %p293
      %p295 = scmp.le.s32.totalorder 1, %s20
      %p296 = scmp.lt.s32.totalorder %s20, 3
      %p297 = pnand %p295, %p296
      %p298 = pneg %p297
      // Predicated region
      $region9: #{tpu_custom_call.1} parent=5 // pred_check
        _
      $region10: #{tpu_custom_call.1} parent=5 // pred_check_branch
        %300 = sbr.rel (%p297) target = $region12
      $region11: #{tpu_custom_call.1} parent=5 // pred_region
        %s301 = ssub.s32 %s20, 1
        // Predicated region
        $region13: #{tpu_custom_call.1} parent=11 // pred_check
          %p302 = pneg %p93
        $region14: #{tpu_custom_call.1} parent=11 // pred_check_branch
          %304 = sbr.rel (%p302) target = $region16
        $region15: #{tpu_custom_call.1} parent=11 // pred_region
          _
        $region16: #{tpu_custom_call.1} parent=11 // pred_fallthru
          _
        // Predicated region
        $region17: #{tpu_custom_call.1} parent=11 // pred_check
          %p305 = pneg %p114
        $region18: #{tpu_custom_call.1} parent=11 // pred_check_branch
          %307 = sbr.rel (%p305) target = $region20
        $region19: #{tpu_custom_call.1} parent=11 // pred_region
          _
        $region20: #{tpu_custom_call.1} parent=11 // pred_fallthru
          _
        // Predicated region
        $region21: #{tpu_custom_call.1} parent=11 // pred_check
          %p308 = pneg %p135
        $region22: #{tpu_custom_call.1} parent=11 // pred_check_branch
          %310 = sbr.rel (%p308) target = $region24
        $region23: #{tpu_custom_call.1} parent=11 // pred_region
          _
        $region24: #{tpu_custom_call.1} parent=11 // pred_fallthru
          _
        // Predicated region
        $region25: #{tpu_custom_call.1} parent=11 // pred_check
          %p311 = pneg %p156
        $region26: #{tpu_custom_call.1} parent=11 // pred_check_branch
          %313 = sbr.rel (%p311) target = $region28
        $region27: #{tpu_custom_call.1} parent=11 // pred_region
          _
        $region28: #{tpu_custom_call.1} parent=11 // pred_fallthru
          _
        // Predicated region
        $region29: #{tpu_custom_call.1} parent=11 // pred_check
          %p314 = pneg %p177
        $region30: #{tpu_custom_call.1} parent=11 // pred_check_branch
          %316 = sbr.rel (%p314) target = $region32
        $region31: #{tpu_custom_call.1} parent=11 // pred_region
          _
        $region32: #{tpu_custom_call.1} parent=11 // pred_fallthru
          _
        // Predicated region
        $region33: #{tpu_custom_call.1} parent=11 // pred_check
          %p317 = pneg %p198
        $region34: #{tpu_custom_call.1} parent=11 // pred_check_branch
          %319 = sbr.rel (%p317) target = $region36
        $region35: #{tpu_custom_call.1} parent=11 // pred_region
          _
        $region36: #{tpu_custom_call.1} parent=11 // pred_fallthru
          _
        // Predicated region
        $region37: #{tpu_custom_call.1} parent=11 // pred_check
          %p320 = pneg %p219
        $region38: #{tpu_custom_call.1} parent=11 // pred_check_branch
          %322 = sbr.rel (%p320) target = $region40
        $region39: #{tpu_custom_call.1} parent=11 // pred_region
          _
        $region40: #{tpu_custom_call.1} parent=11 // pred_fallthru
          _
        // Predicated region
        $region41: #{tpu_custom_call.1} parent=11 // pred_check
          %p323 = pneg %p240
        $region42: #{tpu_custom_call.1} parent=11 // pred_check_branch
          %325 = sbr.rel (%p323) target = $region44
        $region43: #{tpu_custom_call.1} parent=11 // pred_region
          _
        $region44: #{tpu_custom_call.1} parent=11 // pred_fallthru
          _
        // Predicated region
        $region45: #{tpu_custom_call.1} parent=11 // pred_check
          %p326 = pneg %p261
        $region46: #{tpu_custom_call.1} parent=11 // pred_check_branch
          %328 = sbr.rel (%p326) target = $region48
        $region47: #{tpu_custom_call.1} parent=11 // pred_region
          _
        $region48: #{tpu_custom_call.1} parent=11 // pred_fallthru
          _
      $region12: #{tpu_custom_call.1} parent=5 // pred_fallthru
        _
      %p329 = scmp.lt.s32.totalorder %s20, 2
      // Predicated region
      $region49: #{tpu_custom_call.1} parent=5 // pred_check
        %p330 = pneg %p329
      $region50: #{tpu_custom_call.1} parent=5 // pred_check_branch
        %332 = sbr.rel (%p330) target = $region52
      $region51: #{tpu_custom_call.1} parent=5 // pred_region
        // Predicated region
        $region53: #{tpu_custom_call.1} parent=51 // pred_check
          %p333 = pneg %p40
        $region54: #{tpu_custom_call.1} parent=51 // pred_check_branch
          %335 = sbr.rel (%p333) target = $region56
        $region55: #{tpu_custom_call.1} parent=51 // pred_region
          %p336 = scmp.lt.s32.totalorder %s20, 1
          %s337 = scalar_select %p336, %s20, 1
          %s338 = smul.addr %s337, 4
          %s339 = scalar_lea.vmem %s0, %s338
        $region56: #{tpu_custom_call.1} parent=51 // pred_fallthru
          _
        // Predicated region
        $region57: #{tpu_custom_call.1} parent=51 // pred_check
          %p340 = pneg %p66
        $region58: #{tpu_custom_call.1} parent=51 // pred_check_branch
          %342 = sbr.rel (%p340) target = $region60
        $region59: #{tpu_custom_call.1} parent=51 // pred_region
          %p343 = scmp.lt.s32.totalorder %s20, 1
          %s344 = scalar_select %p343, %s20, 1
          %s345 = smul.addr %s344, 4
          %s346 = scalar_lea.vmem %s1, %s345
        $region60: #{tpu_custom_call.1} parent=51 // pred_fallthru
          _
      $region52: #{tpu_custom_call.1} parent=5 // pred_fallthru
        _
      %p347 = scmp.le.s32.totalorder 1, %s20
      %p348 = scmp.lt.s32.totalorder %s20, 3
      %p349 = pnand %p347, %p348
      %p350 = pneg %p349
      // Predicated region
      $region61: #{tpu_custom_call.1} parent=5 // pred_check
        _
      $region62: #{tpu_custom_call.1} parent=5 // pred_check_branch
        %352 = sbr.rel (%p349) target = $region64
      $region63: #{tpu_custom_call.1} parent=5 // pred_region
        %s353 = ssub.s32 %s20, 1
        %p354 = scmp.lt.s32.totalorder %s25, 1
        %s355 = scalar_select %p354, %s25, 1
        %s356 = smul.addr %s355, 4
        %s357 = scalar_lea.vmem %s0, %s356
        %p358 = pneg %p46
        %p359 = pneg %p43
        %p360 = scmp.lt.s32.totalorder %s25, 1
        %s361 = scalar_select %p360, %s25, 1
        %s362 = smul.addr %s361, 4
        %s363 = scalar_lea.vmem %s1, %s362
        %p364 = pneg %p72
        %p365 = pneg %p69
        %p366 = pneg %p93
        %p367 = pneg %p90
        %p368 = pneg %p114
        %p369 = pneg %p111
        %p370 = pneg %p135
        %p371 = pneg %p132
        %p372 = pneg %p156
        %p373 = pneg %p153
        %p374 = pneg %p177
        %p375 = pneg %p174
        %p376 = pneg %p198
        %p377 = pneg %p195
        %p378 = pneg %p219
        %p379 = pneg %p216
        %p380 = pneg %p240
        %p381 = pneg %p237
        %p382 = pneg %p261
        %p383 = pneg %p258
        %p384 = pneg %p287
        %p385 = pneg %p284
        %s386 = sand.u32 %s274, 1
        %s387 = scalar_lea.sflag [#allocation3], %s386
        %s388 = sand.u32 %s274, 1
        %s389 = smul.addr %s388, 4
        %s390 = scalar_lea.vmem [#allocation2], %s389
        %p391 = scmp.lt.s32.totalorder %s25, 1
        %s392 = scalar_select %p391, %s25, 1
        %s393 = smul.addr %s392, 4
        %s394 = scalar_lea.vmem %s0, %s393
        %p395 = scmp.lt.s32.totalorder %s25, 1
        %s396 = scalar_select %p395, %s25, 1
        %s397 = smul.addr %s396, 4
        %s398 = scalar_lea.vmem %s1, %s397
        %v399 = vld [vmem:[%s2] sm:$0xff]
        %v400 = vld [vmem:[%s2 + $0x8] sm:$0xff]
        %v401 = vld [vmem:[%s2 + $0x10] sm:$0xff]
        %v402 = vld [vmem:[%s2 + $0x18] sm:$0xff]
        %v403 = vld [vmem:[%s394] sm:$0xf]
        %v404 = vld [vmem:[%s3] sm:$0xff]
        %v405 = vld [vmem:[%s3 + $0x8] sm:$0xff]
        %v406 = vld [vmem:[%s3 + $0x10] sm:$0xff]
        %v407 = vld [vmem:[%s3 + $0x18] sm:$0xff]
        %v408 = vld [vmem:[%s398] sm:$0xf]
        %vm409 = vcmask 31744
        %v411 = vsel %vm409, %v404, 0
        %v414 = vsel %vm409, %v405, 0
        %v417 = vsel %vm409, %v406, 0
        %v420 = vsel %vm409, %v407, 0
        %vm422 = vcmask 1043456
        %v424 = vsel %vm422, %v408, 0
        %426 = vmatprep.subr.mxu0 0.0
        %427 = vmatpush1.msra.mxu0 %v424
        %428 = vmatprep.subr.mxu0 0.0
        %429 = vmatpush1.msra.mxu0 0.0
        %430 = vmatprep.subr.mxu0 0.0
        %431 = vmatpush1.msra.mxu0 0.0
        %432 = vmatprep.subr.mxu0 0.0
        %433 = vmatpush1.msra.mxu0 0.0
        %434 = vmatprep.subr.mxu0 0.0
        %435 = vmatpush1.msra.mxu0 0.0
        %436 = vmatprep.subr.mxu0 0.0
        %437 = vmatpush1.msra.mxu0 0.0
        %438 = vmatprep.subr.mxu0 0.0
        %439 = vmatpush1.msra.mxu0 0.0
        %440 = vmatprep.subr.mxu0 0.0
        %441 = vmatpush1.msra.mxu0 0.0
        %442 = vmatprep.subr.mxu0 0.0
        %443 = vmatpush1.msra.mxu0 0.0
        %444 = vmatprep.subr.mxu0 0.0
        %445 = vmatpush1.msra.mxu0 0.0
        %446 = vmatprep.subr.mxu0 0.0
        %447 = vmatpush1.msra.mxu0 0.0
        %448 = vmatprep.subr.mxu0 0.0
        %449 = vmatpush1.msra.mxu0 0.0
        %450 = vmatprep.subr.mxu0 0.0
        %451 = vmatpush1.msra.mxu0 0.0
        %452 = vmatprep.subr.mxu0 0.0
        %453 = vmatpush1.msra.mxu0 0.0
        %454 = vmatprep.subr.mxu0 0.0
        %455 = vmatpush1.msra.mxu0 0.0
        %456 = vmatprep.subr.mxu0 0.0
        %457 = vmatpush1.msra.mxu0 0.0
        %458 = vmatprep.subr.mxu0 0.0
        %459 = vmatpush1.msra.mxu0 0.0
        %460 = vmatprep.subr.mxu0 0.0
        %461 = vmatpush1.msra.mxu0 0.0
        %462 = vmatprep.subr.mxu0 0.0
        %463 = vmatpush1.msra.mxu0 0.0
        %464 = vmatprep.subr.mxu0 0.0
        %465 = vmatpush1.msra.mxu0 0.0
        %466 = vmatprep.subr.mxu0 0.0
        %467 = vmatpush1.msra.mxu0 0.0
        %468 = vmatprep.subr.mxu0 0.0
        %469 = vmatpush1.msra.mxu0 0.0
        %470 = vmatprep.subr.mxu0 0.0
        %471 = vmatpush1.msra.mxu0 0.0
        %472 = vmatprep.subr.mxu0 0.0
        %473 = vmatpush1.msra.mxu0 0.0
        %474 = vmatprep.subr.mxu0 0.0
        %475 = vmatpush1.msra.mxu0 0.0
        %476 = vmatprep.subr.mxu0 0.0
        %477 = vmatpush1.msra.mxu0 0.0
        %478 = vmatprep.subr.mxu0 0.0
        %479 = vmatpush1.msra.mxu0 0.0
        %480 = vmatprep.subr.mxu0 0.0
        %481 = vmatpush1.msra.mxu0 0.0
        %482 = vmatprep.subr.mxu0 0.0
        %483 = vmatpush1.msra.mxu0 0.0
        %484 = vmatprep.subr.mxu0 0.0
        %485 = vmatpush1.msra.mxu0 0.0
        %486 = vmatprep.subr.mxu0 0.0
        %487 = vmatpush1.msra.mxu0 0.0
        %488 = vmatprep.subr.mxu0 0.0
        %489 = vmatpush1.msra.mxu0 0.0
        %490 = vmatprep.mubr.f32.mxu0 0.0
        %491 = vmatmul.mubr.f32.gmra.mrb[0].mxu0 %v411
        %v492 = vpop.f32.mrb[0].mxu0
        %v493 = vadd.f32 0.0, %v492
        %v494 = vpop.f32.mrb[0].mxu0
        %495 = vmatprep.mubr.f32.mxu0 0.0
        %496 = vmatmul.mubr.f32.gmra.mrb[0].mxu0 %v414
        %v497 = vpop.f32.mrb[0].mxu0
        %v498 = vadd.f32 0.0, %v497
        %v499 = vpop.f32.mrb[0].mxu0
        %500 = vmatprep.mubr.f32.mxu0 0.0
        %501 = vmatmul.mubr.f32.gmra.mrb[0].mxu0 %v417
        %v502 = vpop.f32.mrb[0].mxu0
        %v503 = vadd.f32 0.0, %v502
        %v504 = vpop.f32.mrb[0].mxu0
        %505 = vmatprep.mubr.f32.mxu0 0.0
        %506 = vmatmul.mubr.f32.gmra.mrb[0].mxu0 %v420
        %v507 = vpop.f32.mrb[0].mxu0
        %v508 = vadd.f32 0.0, %v507
        %v509 = vpop.f32.mrb[0].mxu0
        %510 = vdwg.mxu0
        %v512 = vsel %vm409, %v399, 0
        %v515 = vsel %vm409, %v400, 0
        %v518 = vsel %vm409, %v401, 0
        %v521 = vsel %vm409, %v402, 0
        %v524 = vsel %vm422, %v403, 0
        %526 = vmatprep.subr.mxu0 0.0
        %527 = vmatpush1.msra.mxu0 %v524
        %528 = vmatprep.subr.mxu0 0.0
        %529 = vmatpush1.msra.mxu0 0.0
        %530 = vmatprep.subr.mxu0 0.0
        %531 = vmatpush1.msra.mxu0 0.0
        %532 = vmatprep.subr.mxu0 0.0
        %533 = vmatpush1.msra.mxu0 0.0
        %534 = vmatprep.subr.mxu0 0.0
        %535 = vmatpush1.msra.mxu0 0.0
        %536 = vmatprep.subr.mxu0 0.0
        %537 = vmatpush1.msra.mxu0 0.0
        %538 = vmatprep.subr.mxu0 0.0
        %539 = vmatpush1.msra.mxu0 0.0
        %540 = vmatprep.subr.mxu0 0.0
        %541 = vmatpush1.msra.mxu0 0.0
        %542 = vmatprep.subr.mxu0 0.0
        %543 = vmatpush1.msra.mxu0 0.0
        %544 = vmatprep.subr.mxu0 0.0
        %545 = vmatpush1.msra.mxu0 0.0
        %546 = vmatprep.subr.mxu0 0.0
        %547 = vmatpush1.msra.mxu0 0.0
        %548 = vmatprep.subr.mxu0 0.0
        %549 = vmatpush1.msra.mxu0 0.0
        %550 = vmatprep.subr.mxu0 0.0
        %551 = vmatpush1.msra.mxu0 0.0
        %552 = vmatprep.subr.mxu0 0.0
        %553 = vmatpush1.msra.mxu0 0.0
        %554 = vmatprep.subr.mxu0 0.0
        %555 = vmatpush1.msra.mxu0 0.0
        %556 = vmatprep.subr.mxu0 0.0
        %557 = vmatpush1.msra.mxu0 0.0
        %558 = vmatprep.subr.mxu0 0.0
        %559 = vmatpush1.msra.mxu0 0.0
        %560 = vmatprep.subr.mxu0 0.0
        %561 = vmatpush1.msra.mxu0 0.0
        %562 = vmatprep.subr.mxu0 0.0
        %563 = vmatpush1.msra.mxu0 0.0
        %564 = vmatprep.subr.mxu0 0.0
        %565 = vmatpush1.msra.mxu0 0.0
        %566 = vmatprep.subr.mxu0 0.0
        %567 = vmatpush1.msra.mxu0 0.0
        %568 = vmatprep.subr.mxu0 0.0
        %569 = vmatpush1.msra.mxu0 0.0
        %570 = vmatprep.subr.mxu0 0.0
        %571 = vmatpush1.msra.mxu0 0.0
        %572 = vmatprep.subr.mxu0 0.0
        %573 = vmatpush1.msra.mxu0 0.0
        %574 = vmatprep.subr.mxu0 0.0
        %575 = vmatpush1.msra.mxu0 0.0
        %576 = vmatprep.subr.mxu0 0.0
        %577 = vmatpush1.msra.mxu0 0.0
        %578 = vmatprep.subr.mxu0 0.0
        %579 = vmatpush1.msra.mxu0 0.0
        %580 = vmatprep.subr.mxu0 0.0
        %581 = vmatpush1.msra.mxu0 0.0
        %582 = vmatprep.subr.mxu0 0.0
        %583 = vmatpush1.msra.mxu0 0.0
        %584 = vmatprep.subr.mxu0 0.0
        %585 = vmatpush1.msra.mxu0 0.0
        %586 = vmatprep.subr.mxu0 0.0
        %587 = vmatpush1.msra.mxu0 0.0
        %588 = vmatprep.subr.mxu0 0.0
        %589 = vmatpush1.msra.mxu0 0.0
        %590 = vmatprep.mubr.f32.mxu0 0.0
        %591 = vmatmul.mubr.f32.gmra.mrb[0].mxu0 %v512
        %v592 = vpop.f32.mrb[0].mxu0
        %v593 = vadd.f32 %v493, %v592
        %v594 = vpop.f32.mrb[0].mxu0
        %595 = vmatprep.mubr.f32.mxu0 0.0
        %596 = vmatmul.mubr.f32.gmra.mrb[0].mxu0 %v515
        %v597 = vpop.f32.mrb[0].mxu0
        %v598 = vadd.f32 %v498, %v597
        %v599 = vpop.f32.mrb[0].mxu0
        %600 = vmatprep.mubr.f32.mxu0 0.0
        %601 = vmatmul.mubr.f32.gmra.mrb[0].mxu0 %v518
        %v602 = vpop.f32.mrb[0].mxu0
        %v603 = vadd.f32 %v503, %v602
        %v604 = vpop.f32.mrb[0].mxu0
        %605 = vmatprep.mubr.f32.mxu0 0.0
        %606 = vmatmul.mubr.f32.gmra.mrb[0].mxu0 %v521
        %v607 = vpop.f32.mrb[0].mxu0
        %v608 = vadd.f32 %v508, %v607
        %v609 = vpop.f32.mrb[0].mxu0
        %610 = vdwg.mxu0
        %v611 = vld [vmem:[%s4] sm:$0xff]
        %v612 = vld [vmem:[%s4 + $0x8] sm:$0xff]
        %v613 = vld [vmem:[%s4 + $0x10] sm:$0xff]
        %v614 = vld [vmem:[%s4 + $0x18] sm:$0xff]
        %616 = vset.pattern.permute.xlu0 0
        %617 = vperm.xlu0 %616, %v611
        %v618 = vpop.permute.xlu0 %617
        %621 = vset.pattern.permute.xlu0 0
        %622 = vperm.xlu0 %621, %v612
        %v623 = vpop.permute.xlu0 %622
        %626 = vset.pattern.permute.xlu0 0
        %627 = vperm.xlu0 %626, %v613
        %v628 = vpop.permute.xlu0 %627
        %631 = vset.pattern.permute.xlu0 0
        %632 = vperm.xlu0 %631, %v614
        %v633 = vpop.permute.xlu0 %632
        %v635 = vadd.f32 %v593, %v618
        %v636 = vadd.f32 %v598, %v623
        %v637 = vadd.f32 %v603, %v628
        %v638 = vadd.f32 %v608, %v633
        %v639 = vand.u32 2147483647, %v635
        %vm640 = vcmp.le.f32.partialorder %v639, 0.7853982
        %vm641 = vcmp.lt.s32.totalorder %v635, 0
        %v642 = vand.u32 %v635, 2139095040
        %v643 = vshrl.u32 %v642, 23
        %v644 = vsub.s32 %v643, 127
        %v645 = vand.u32 2147483647, %v635
        %v646 = vand.u32 %v645, 8388607
        %v647 = vor.u32 %v646, 8388608
        %v648 = vsub.s32 0, %v647
        %v649 = vadd.s32 %v644, 1
        %vm650 = vcmp.gt.s32.totalorder %v649, 0
        %v651 = vsel %vm650, %v649, 0
        %v652 = vshrl.u32 %v651, 5
        %v653 = vand.u32 %v651, 31
        %v654 = vsub.s32 32, %v653
        %v655 = vshrl.u32 683565275, %v654
        %v656 = vshll.u32 683565275, %v653
        %v657 = vshrl.u32 2475754826, %v654
        %v658 = vor.u32 %v656, %v657
        %v659 = vshll.u32 2475754826, %v653
        %v660 = vshrl.u32 2131351028, %v654
        %v661 = vor.u32 %v659, %v660
        %v662 = vshll.u32 2131351028, %v653
        %v663 = vshrl.u32 2102212464, %v654
        %v664 = vor.u32 %v662, %v663
        %v665 = vshll.u32 2102212464, %v653
        %v666 = vshrl.u32 920167782, %v654
        %v667 = vor.u32 %v665, %v666
        %v668 = vshll.u32 920167782, %v653
        %v669 = vshrl.u32 1326507024, %v654
        %v670 = vor.u32 %v668, %v669
        %vm671 = vcmp.lt.s32.totalorder %v652, 1
        %vm672 = vcmp.lt.s32.totalorder %v652, 2
        %vm673 = vcmp.lt.s32.totalorder %v652, 3
        %vm674 = vcmp.lt.s32.totalorder %v652, 4
        %v675 = vsel %vm671, %v655, %v658
        %v676 = vsel %vm674, %v664, 2102212464
        %v677 = vsel %vm673, %v661, %v676
        %v678 = vsel %vm672, %v675, %v677
        %v679 = vsel %vm671, %v658, %v661
        %v680 = vsel %vm674, %v667, 920167782
        %v681 = vsel %vm673, %v664, %v680
        %v682 = vsel %vm672, %v679, %v681
        %v683 = vsel %vm671, %v661, %v664
        %v684 = vsel %vm674, %v670, 1326507024
        %v685 = vsel %vm673, %v667, %v684
        %v686 = vsel %vm672, %v683, %v685
        %v687 = vshll.u32 %v647, 8
        %v688 = vmul.u32.u64.compose %v687, %v686
        %v689 = vextract.low.u32 %v688
        %v690 = vextract.high.u32 %v688
        %v691 = vmul.u32.u64.compose %v687, %v682
        %v692 = vextract.low.u32 %v691
        %v693 = vextract.high.u32 %v691
        %v694 = vmul.u32 %v687, %v678
        %v695 = vadd.s32 %v690, %v692
        %vm696 = vc.u32 %v690, %v692
        %v697 = vadd.s32 %v693, 1
        %v698 = vsel %vm696, %v697, %v693
        %v699 = vadd.s32 %v694, %v698
        %v700 = vadd.s32 %v699, 536870912
        %v701 = vshrl.u32 %v700, 30
        %v702 = vshll.u32 %v701, 30
        %v703 = vsub.s32 %v699, %v702
        %vm704 = vcmp.lt.s32.totalorder %v703, 0
        %v705 = vsub.s32 0, %v703
        %v706 = vsel %vm704, %v705, %v703
        %v707 = vclz %v706
        %v708 = vsub.s32 %v707, 2
        %vm709 = vcmp.gt.s32.totalorder 0, %v708
        %v710 = vsel %vm709, 0, %v708
        %v711 = vsub.s32 32, %v710
        %v712 = vshll.u32 %v703, %v710
        %v713 = vshrl.u32 %v695, %v711
        %v714 = vor.u32 %v712, %v713
        %v715 = vsub.s32 4294967266, %v710
        %v716 = vadd.s32 %v715, 127
        %v717 = vshll.u32 %v716, 23
        %v718 = vor.u32 4788187, %v717
        %v719 = vand.u32 2147483647, %v718
        %v721 = vcvt.s32.f32 %v714
        %v722 = vmul.f32 %v721, %v719
        %v723 = vxor.u32 %v722, 2147483648
        %v724 = vsel %vm641, %v723, %v722
        %v725 = vsub.s32 4, %v701
        %v726 = vsel %vm641, %v725, %v701
        %v727 = vsel %vm640, %v635, %v724
        %v728 = vsel %vm640, 0, %v726
        %v729 = vcosq.f32.pop %v727
        %v730 = vsinq.f32.pop %v727
        %vm731 = vweird.f32 %v635
        %v732 = vadd.s32 %v728, 3
        %v733 = vand.u32 %v732, 3
        %vm734 = vcmp.lt.s32.totalorder %v733, 2
        %vm735 = vcmp.eq.s32.totalorder %v733, 0
        %v736 = vxor.u32 %v730, 2147483648
        %v737 = vsel %vm735, %v729, %v736
        %vm738 = vcmp.eq.s32.totalorder %v733, 2
        %v739 = vxor.u32 %v729, 2147483648
        %v740 = vsel %vm738, %v739, %v730
        %v741 = vsel %vm734, %v737, %v740
        %v742 = vsel %vm731, nan, %v741
        %v743 = vand.u32 2147483647, %v636
        %vm744 = vcmp.le.f32.partialorder %v743, 0.7853982
        %vm745 = vcmp.lt.s32.totalorder %v636, 0
        %v746 = vand.u32 %v636, 2139095040
        %v747 = vshrl.u32 %v746, 23
        %v748 = vsub.s32 %v747, 127
        %v749 = vand.u32 2147483647, %v636
        %v750 = vand.u32 %v749, 8388607
        %v751 = vor.u32 %v750, 8388608
        %v752 = vsub.s32 0, %v751
        %v753 = vadd.s32 %v748, 1
        %vm754 = vcmp.gt.s32.totalorder %v753, 0
        %v755 = vsel %vm754, %v753, 0
        %v756 = vshrl.u32 %v755, 5
        %v757 = vand.u32 %v755, 31
        %v758 = vsub.s32 32, %v757
        %v759 = vshrl.u32 683565275, %v758
        %v760 = vshll.u32 683565275, %v757
        %v761 = vshrl.u32 2475754826, %v758
        %v762 = vor.u32 %v760, %v761
        %v763 = vshll.u32 2475754826, %v757
        %v764 = vshrl.u32 2131351028, %v758
        %v765 = vor.u32 %v763, %v764
        %v766 = vshll.u32 2131351028, %v757
        %v767 = vshrl.u32 2102212464, %v758
        %v768 = vor.u32 %v766, %v767
        %v769 = vshll.u32 2102212464, %v757
        %v770 = vshrl.u32 920167782, %v758
        %v771 = vor.u32 %v769, %v770
        %v772 = vshll.u32 920167782, %v757
        %v773 = vshrl.u32 1326507024, %v758
        %v774 = vor.u32 %v772, %v773
        %vm775 = vcmp.lt.s32.totalorder %v756, 1
        %vm776 = vcmp.lt.s32.totalorder %v756, 2
        %vm777 = vcmp.lt.s32.totalorder %v756, 3
        %vm778 = vcmp.lt.s32.totalorder %v756, 4
        %v779 = vsel %vm775, %v759, %v762
        %v780 = vsel %vm778, %v768, 2102212464
        %v781 = vsel %vm777, %v765, %v780
        %v782 = vsel %vm776, %v779, %v781
        %v783 = vsel %vm775, %v762, %v765
        %v784 = vsel %vm778, %v771, 920167782
        %v785 = vsel %vm777, %v768, %v784
        %v786 = vsel %vm776, %v783, %v785
        %v787 = vsel %vm775, %v765, %v768
        %v788 = vsel %vm778, %v774, 1326507024
        %v789 = vsel %vm777, %v771, %v788
        %v790 = vsel %vm776, %v787, %v789
        %v791 = vshll.u32 %v751, 8
        %v792 = vmul.u32.u64.compose %v791, %v790
        %v793 = vextract.low.u32 %v792
        %v794 = vextract.high.u32 %v792
        %v795 = vmul.u32.u64.compose %v791, %v786
        %v796 = vextract.low.u32 %v795
        %v797 = vextract.high.u32 %v795
        %v798 = vmul.u32 %v791, %v782
        %v799 = vadd.s32 %v794, %v796
        %vm800 = vc.u32 %v794, %v796
        %v801 = vadd.s32 %v797, 1
        %v802 = vsel %vm800, %v801, %v797
        %v803 = vadd.s32 %v798, %v802
        %v804 = vadd.s32 %v803, 536870912
        %v805 = vshrl.u32 %v804, 30
        %v806 = vshll.u32 %v805, 30
        %v807 = vsub.s32 %v803, %v806
        %vm808 = vcmp.lt.s32.totalorder %v807, 0
        %v809 = vsub.s32 0, %v807
        %v810 = vsel %vm808, %v809, %v807
        %v811 = vclz %v810
        %v812 = vsub.s32 %v811, 2
        %vm813 = vcmp.gt.s32.totalorder 0, %v812
        %v814 = vsel %vm813, 0, %v812
        %v815 = vsub.s32 32, %v814
        %v816 = vshll.u32 %v807, %v814
        %v817 = vshrl.u32 %v799, %v815
        %v818 = vor.u32 %v816, %v817
        %v819 = vsub.s32 4294967266, %v814
        %v820 = vadd.s32 %v819, 127
        %v821 = vshll.u32 %v820, 23
        %v822 = vor.u32 4788187, %v821
        %v823 = vand.u32 2147483647, %v822
        %v825 = vcvt.s32.f32 %v818
        %v826 = vmul.f32 %v825, %v823
        %v827 = vxor.u32 %v826, 2147483648
        %v828 = vsel %vm745, %v827, %v826
        %v829 = vsub.s32 4, %v805
        %v830 = vsel %vm745, %v829, %v805
        %v831 = vsel %vm744, %v636, %v828
        %v832 = vsel %vm744, 0, %v830
        %v833 = vcosq.f32.pop %v831
        %v834 = vsinq.f32.pop %v831
        %vm835 = vweird.f32 %v636
        %v836 = vadd.s32 %v832, 3
        %v837 = vand.u32 %v836, 3
        %vm838 = vcmp.lt.s32.totalorder %v837, 2
        %vm839 = vcmp.eq.s32.totalorder %v837, 0
        %v840 = vxor.u32 %v834, 2147483648
        %v841 = vsel %vm839, %v833, %v840
        %vm842 = vcmp.eq.s32.totalorder %v837, 2
        %v843 = vxor.u32 %v833, 2147483648
        %v844 = vsel %vm842, %v843, %v834
        %v845 = vsel %vm838, %v841, %v844
        %v846 = vsel %vm835, nan, %v845
        %v847 = vand.u32 2147483647, %v637
        %vm848 = vcmp.le.f32.partialorder %v847, 0.7853982
        %vm849 = vcmp.lt.s32.totalorder %v637, 0
        %v850 = vand.u32 %v637, 2139095040
        %v851 = vshrl.u32 %v850, 23
        %v852 = vsub.s32 %v851, 127
        %v853 = vand.u32 2147483647, %v637
        %v854 = vand.u32 %v853, 8388607
        %v855 = vor.u32 %v854, 8388608
        %v856 = vsub.s32 0, %v855
        %v857 = vadd.s32 %v852, 1
        %vm858 = vcmp.gt.s32.totalorder %v857, 0
        %v859 = vsel %vm858, %v857, 0
        %v860 = vshrl.u32 %v859, 5
        %v861 = vand.u32 %v859, 31
        %v862 = vsub.s32 32, %v861
        %v863 = vshrl.u32 683565275, %v862
        %v864 = vshll.u32 683565275, %v861
        %v865 = vshrl.u32 2475754826, %v862
        %v866 = vor.u32 %v864, %v865
        %v867 = vshll.u32 2475754826, %v861
        %v868 = vshrl.u32 2131351028, %v862
        %v869 = vor.u32 %v867, %v868
        %v870 = vshll.u32 2131351028, %v861
        %v871 = vshrl.u32 2102212464, %v862
        %v872 = vor.u32 %v870, %v871
        %v873 = vshll.u32 2102212464, %v861
        %v874 = vshrl.u32 920167782, %v862
        %v875 = vor.u32 %v873, %v874
        %v876 = vshll.u32 920167782, %v861
        %v877 = vshrl.u32 1326507024, %v862
        %v878 = vor.u32 %v876, %v877
        %vm879 = vcmp.lt.s32.totalorder %v860, 1
        %vm880 = vcmp.lt.s32.totalorder %v860, 2
        %vm881 = vcmp.lt.s32.totalorder %v860, 3
        %vm882 = vcmp.lt.s32.totalorder %v860, 4
        %v883 = vsel %vm879, %v863, %v866
        %v884 = vsel %vm882, %v872, 2102212464
        %v885 = vsel %vm881, %v869, %v884
        %v886 = vsel %vm880, %v883, %v885
        %v887 = vsel %vm879, %v866, %v869
        %v888 = vsel %vm882, %v875, 920167782
        %v889 = vsel %vm881, %v872, %v888
        %v890 = vsel %vm880, %v887, %v889
        %v891 = vsel %vm879, %v869, %v872
        %v892 = vsel %vm882, %v878, 1326507024
        %v893 = vsel %vm881, %v875, %v892
        %v894 = vsel %vm880, %v891, %v893
        %v895 = vshll.u32 %v855, 8
        %v896 = vmul.u32.u64.compose %v895, %v894
        %v897 = vextract.low.u32 %v896
        %v898 = vextract.high.u32 %v896
        %v899 = vmul.u32.u64.compose %v895, %v890
        %v900 = vextract.low.u32 %v899
        %v901 = vextract.high.u32 %v899
        %v902 = vmul.u32 %v895, %v886
        %v903 = vadd.s32 %v898, %v900
        %vm904 = vc.u32 %v898, %v900
        %v905 = vadd.s32 %v901, 1
        %v906 = vsel %vm904, %v905, %v901
        %v907 = vadd.s32 %v902, %v906
        %v908 = vadd.s32 %v907, 536870912
        %v909 = vshrl.u32 %v908, 30
        %v910 = vshll.u32 %v909, 30
        %v911 = vsub.s32 %v907, %v910
        %vm912 = vcmp.lt.s32.totalorder %v911, 0
        %v913 = vsub.s32 0, %v911
        %v914 = vsel %vm912, %v913, %v911
        %v915 = vclz %v914
        %v916 = vsub.s32 %v915, 2
        %vm917 = vcmp.gt.s32.totalorder 0, %v916
        %v918 = vsel %vm917, 0, %v916
        %v919 = vsub.s32 32, %v918
        %v920 = vshll.u32 %v911, %v918
        %v921 = vshrl.u32 %v903, %v919
        %v922 = vor.u32 %v920, %v921
        %v923 = vsub.s32 4294967266, %v918
        %v924 = vadd.s32 %v923, 127
        %v925 = vshll.u32 %v924, 23
        %v926 = vor.u32 4788187, %v925
        %v927 = vand.u32 2147483647, %v926
        %v929 = vcvt.s32.f32 %v922
        %v930 = vmul.f32 %v929, %v927
        %v931 = vxor.u32 %v930, 2147483648
        %v932 = vsel %vm849, %v931, %v930
        %v933 = vsub.s32 4, %v909
        %v934 = vsel %vm849, %v933, %v909
        %v935 = vsel %vm848, %v637, %v932
        %v936 = vsel %vm848, 0, %v934
        %v937 = vcosq.f32.pop %v935
        %v938 = vsinq.f32.pop %v935
        %vm939 = vweird.f32 %v637
        %v940 = vadd.s32 %v936, 3
        %v941 = vand.u32 %v940, 3
        %vm942 = vcmp.lt.s32.totalorder %v941, 2
        %vm943 = vcmp.eq.s32.totalorder %v941, 0
        %v944 = vxor.u32 %v938, 2147483648
        %v945 = vsel %vm943, %v937, %v944
        %vm946 = vcmp.eq.s32.totalorder %v941, 2
        %v947 = vxor.u32 %v937, 2147483648
        %v948 = vsel %vm946, %v947, %v938
        %v949 = vsel %vm942, %v945, %v948
        %v950 = vsel %vm939, nan, %v949
        %v951 = vand.u32 2147483647, %v638
        %vm952 = vcmp.le.f32.partialorder %v951, 0.7853982
        %vm953 = vcmp.lt.s32.totalorder %v638, 0
        %v954 = vand.u32 %v638, 2139095040
        %v955 = vshrl.u32 %v954, 23
        %v956 = vsub.s32 %v955, 127
        %v957 = vand.u32 2147483647, %v638
        %v958 = vand.u32 %v957, 8388607
        %v959 = vor.u32 %v958, 8388608
        %v960 = vsub.s32 0, %v959
        %v961 = vadd.s32 %v956, 1
        %vm962 = vcmp.gt.s32.totalorder %v961, 0
        %v963 = vsel %vm962, %v961, 0
        %v964 = vshrl.u32 %v963, 5
        %v965 = vand.u32 %v963, 31
        %v966 = vsub.s32 32, %v965
        %v967 = vshrl.u32 683565275, %v966
        %v968 = vshll.u32 683565275, %v965
        %v969 = vshrl.u32 2475754826, %v966
        %v970 = vor.u32 %v968, %v969
        %v971 = vshll.u32 2475754826, %v965
        %v972 = vshrl.u32 2131351028, %v966
        %v973 = vor.u32 %v971, %v972
        %v974 = vshll.u32 2131351028, %v965
        %v975 = vshrl.u32 2102212464, %v966
        %v976 = vor.u32 %v974, %v975
        %v977 = vshll.u32 2102212464, %v965
        %v978 = vshrl.u32 920167782, %v966
        %v979 = vor.u32 %v977, %v978
        %v980 = vshll.u32 920167782, %v965
        %v981 = vshrl.u32 1326507024, %v966
        %v982 = vor.u32 %v980, %v981
        %vm983 = vcmp.lt.s32.totalorder %v964, 1
        %vm984 = vcmp.lt.s32.totalorder %v964, 2
        %vm985 = vcmp.lt.s32.totalorder %v964, 3
        %vm986 = vcmp.lt.s32.totalorder %v964, 4
        %v987 = vsel %vm983, %v967, %v970
        %v988 = vsel %vm986, %v976, 2102212464
        %v989 = vsel %vm985, %v973, %v988
        %v990 = vsel %vm984, %v987, %v989
        %v991 = vsel %vm983, %v970, %v973
        %v992 = vsel %vm986, %v979, 920167782
        %v993 = vsel %vm985, %v976, %v992
        %v994 = vsel %vm984, %v991, %v993
        %v995 = vsel %vm983, %v973, %v976
        %v996 = vsel %vm986, %v982, 1326507024
        %v997 = vsel %vm985, %v979, %v996
        %v998 = vsel %vm984, %v995, %v997
        %v999 = vshll.u32 %v959, 8
        %v1000 = vmul.u32.u64.compose %v999, %v998
        %v1001 = vextract.low.u32 %v1000
        %v1002 = vextract.high.u32 %v1000
        %v1003 = vmul.u32.u64.compose %v999, %v994
        %v1004 = vextract.low.u32 %v1003
        %v1005 = vextract.high.u32 %v1003
        %v1006 = vmul.u32 %v999, %v990
        %v1007 = vadd.s32 %v1002, %v1004
        %vm1008 = vc.u32 %v1002, %v1004
        %v1009 = vadd.s32 %v1005, 1
        %v1010 = vsel %vm1008, %v1009, %v1005
        %v1011 = vadd.s32 %v1006, %v1010
        %v1012 = vadd.s32 %v1011, 536870912
        %v1013 = vshrl.u32 %v1012, 30
        %v1014 = vshll.u32 %v1013, 30
        %v1015 = vsub.s32 %v1011, %v1014
        %vm1016 = vcmp.lt.s32.totalorder %v1015, 0
        %v1017 = vsub.s32 0, %v1015
        %v1018 = vsel %vm1016, %v1017, %v1015
        %v1019 = vclz %v1018
        %v1020 = vsub.s32 %v1019, 2
        %vm1021 = vcmp.gt.s32.totalorder 0, %v1020
        %v1022 = vsel %vm1021, 0, %v1020
        %v1023 = vsub.s32 32, %v1022
        %v1024 = vshll.u32 %v1015, %v1022
        %v1025 = vshrl.u32 %v1007, %v1023
        %v1026 = vor.u32 %v1024, %v1025
        %v1027 = vsub.s32 4294967266, %v1022
        %v1028 = vadd.s32 %v1027, 127
        %v1029 = vshll.u32 %v1028, 23
        %v1030 = vor.u32 4788187, %v1029
        %v1031 = vand.u32 2147483647, %v1030
        %v1033 = vcvt.s32.f32 %v1026
        %v1034 = vmul.f32 %v1033, %v1031
        %v1035 = vxor.u32 %v1034, 2147483648
        %v1036 = vsel %vm953, %v1035, %v1034
        %v1037 = vsub.s32 4, %v1013
        %v1038 = vsel %vm953, %v1037, %v1013
        %v1039 = vsel %vm952, %v638, %v1036
        %v1040 = vsel %vm952, 0, %v1038
        %v1041 = vcosq.f32.pop %v1039
        %v1042 = vsinq.f32.pop %v1039
        %vm1043 = vweird.f32 %v638
        %v1044 = vadd.s32 %v1040, 3
        %v1045 = vand.u32 %v1044, 3
        %vm1046 = vcmp.lt.s32.totalorder %v1045, 2
        %vm1047 = vcmp.eq.s32.totalorder %v1045, 0
        %v1048 = vxor.u32 %v1042, 2147483648
        %v1049 = vsel %vm1047, %v1041, %v1048
        %vm1050 = vcmp.eq.s32.totalorder %v1045, 2
        %v1051 = vxor.u32 %v1041, 2147483648
        %v1052 = vsel %vm1050, %v1051, %v1042
        %v1053 = vsel %vm1046, %v1049, %v1052
        %v1054 = vsel %vm1043, nan, %v1053
        %v1055 = vld [vmem:[%s5] sm:$0xff]
        %v1056 = vld [vmem:[%s5 + $0x8] sm:$0xff]
        %v1057 = vld [vmem:[%s5 + $0x10] sm:$0xff]
        %v1058 = vld [vmem:[%s5 + $0x18] sm:$0xff]
        %v1059 = vld [vmem:[%s6] sm:$0xff]
        %v1060 = vld [vmem:[%s6 + $0x8] sm:$0xff]
        %v1061 = vld [vmem:[%s6 + $0x10] sm:$0xff]
        %v1062 = vld [vmem:[%s6 + $0x18] sm:$0xff]
        %1064 = vset.pattern.permute.xlu0 0
        %1065 = vperm.xlu0 %1064, %v1059
        %v1066 = vpop.permute.xlu0 %1065
        %1069 = vset.pattern.permute.xlu0 0
        %1070 = vperm.xlu0 %1069, %v1060
        %v1071 = vpop.permute.xlu0 %1070
        %1074 = vset.pattern.permute.xlu0 0
        %1075 = vperm.xlu0 %1074, %v1061
        %v1076 = vpop.permute.xlu0 %1075
        %1079 = vset.pattern.permute.xlu0 0
        %1080 = vperm.xlu0 %1079, %v1062
        %v1081 = vpop.permute.xlu0 %1080
        %vm1083 = vcmask 261120
        %v1085 = vsel %vm1083, %v1055, 0
        %v1088 = vsel %vm1083, %v1056, 0
        %v1091 = vsel %vm1083, %v1057, 0
        %v1094 = vsel %vm1083, %v1058, 0
        %1096 = vmatprep.subr.mxu0 0.0
        %1097 = vmatpush1.msra.mxu0 %v742
        %1098 = vmatprep.subr.mxu0 0.0
        %1099 = vmatpush1.msra.mxu0 %v846
        %1100 = vmatprep.subr.mxu0 0.0
        %1101 = vmatpush1.msra.mxu0 %v950
        %1102 = vmatprep.subr.mxu0 0.0
        %1103 = vmatpush1.msra.mxu0 %v1054
        %1104 = vmatprep.subr.mxu0 0.0
        %1105 = vmatpush1.msra.mxu0 0.0
        %1106 = vmatprep.subr.mxu0 0.0
        %1107 = vmatpush1.msra.mxu0 0.0
        %1108 = vmatprep.subr.mxu0 0.0
        %1109 = vmatpush1.msra.mxu0 0.0
        %1110 = vmatprep.subr.mxu0 0.0
        %1111 = vmatpush1.msra.mxu0 0.0
        %1112 = vmatprep.subr.mxu0 0.0
        %1113 = vmatpush1.msra.mxu0 0.0
        %1114 = vmatprep.subr.mxu0 0.0
        %1115 = vmatpush1.msra.mxu0 0.0
        %1116 = vmatprep.subr.mxu0 0.0
        %1117 = vmatpush1.msra.mxu0 0.0
        %1118 = vmatprep.subr.mxu0 0.0
        %1119 = vmatpush1.msra.mxu0 0.0
        %1120 = vmatprep.subr.mxu0 0.0
        %1121 = vmatpush1.msra.mxu0 0.0
        %1122 = vmatprep.subr.mxu0 0.0
        %1123 = vmatpush1.msra.mxu0 0.0
        %1124 = vmatprep.subr.mxu0 0.0
        %1125 = vmatpush1.msra.mxu0 0.0
        %1126 = vmatprep.subr.mxu0 0.0
        %1127 = vmatpush1.msra.mxu0 0.0
        %1128 = vmatprep.subr.mxu0 0.0
        %1129 = vmatpush1.msra.mxu0 0.0
        %1130 = vmatprep.subr.mxu0 0.0
        %1131 = vmatpush1.msra.mxu0 0.0
        %1132 = vmatprep.subr.mxu0 0.0
        %1133 = vmatpush1.msra.mxu0 0.0
        %1134 = vmatprep.subr.mxu0 0.0
        %1135 = vmatpush1.msra.mxu0 0.0
        %1136 = vmatprep.subr.mxu0 0.0
        %1137 = vmatpush1.msra.mxu0 0.0
        %1138 = vmatprep.subr.mxu0 0.0
        %1139 = vmatpush1.msra.mxu0 0.0
        %1140 = vmatprep.subr.mxu0 0.0
        %1141 = vmatpush1.msra.mxu0 0.0
        %1142 = vmatprep.subr.mxu0 0.0
        %1143 = vmatpush1.msra.mxu0 0.0
        %1144 = vmatprep.subr.mxu0 0.0
        %1145 = vmatpush1.msra.mxu0 0.0
        %1146 = vmatprep.subr.mxu0 0.0
        %1147 = vmatpush1.msra.mxu0 0.0
        %1148 = vmatprep.subr.mxu0 0.0
        %1149 = vmatpush1.msra.mxu0 0.0
        %1150 = vmatprep.subr.mxu0 0.0
        %1151 = vmatpush1.msra.mxu0 0.0
        %1152 = vmatprep.subr.mxu0 0.0
        %1153 = vmatpush1.msra.mxu0 0.0
        %1154 = vmatprep.subr.mxu0 0.0
        %1155 = vmatpush1.msra.mxu0 0.0
        %1156 = vmatprep.subr.mxu0 0.0
        %1157 = vmatpush1.msra.mxu0 0.0
        %1158 = vmatprep.subr.mxu0 0.0
        %1159 = vmatpush1.msra.mxu0 0.0
        %1160 = vmatprep.mubr.f32.mxu0 0.0
        %1161 = vmatmul.mubr.f32.gmra.mrb[0].mxu0 %v1085
        %v1162 = vpop.f32.mrb[0].mxu0
        %v1163 = vadd.f32 %v1066, %v1162
        %v1164 = vpop.f32.mrb[0].mxu0
        %1165 = vmatprep.mubr.f32.mxu0 0.0
        %1166 = vmatmul.mubr.f32.gmra.mrb[0].mxu0 %v1088
        %v1167 = vpop.f32.mrb[0].mxu0
        %v1168 = vadd.f32 %v1071, %v1167
        %v1169 = vpop.f32.mrb[0].mxu0
        %1170 = vmatprep.mubr.f32.mxu0 0.0
        %1171 = vmatmul.mubr.f32.gmra.mrb[0].mxu0 %v1091
        %v1172 = vpop.f32.mrb[0].mxu0
        %v1173 = vadd.f32 %v1076, %v1172
        %v1174 = vpop.f32.mrb[0].mxu0
        %1175 = vmatprep.mubr.f32.mxu0 0.0
        %1176 = vmatmul.mubr.f32.gmra.mrb[0].mxu0 %v1094
        %v1177 = vpop.f32.mrb[0].mxu0
        %v1178 = vadd.f32 %v1081, %v1177
        %v1179 = vpop.f32.mrb[0].mxu0
        %1180 = vdwg.mxu0
        %v1181 = vand.u32 2147483647, %v1163
        %vm1182 = vcmp.le.f32.partialorder %v1181, 0.7853982
        %vm1183 = vcmp.lt.s32.totalorder %v1163, 0
        %v1184 = vand.u32 %v1163, 2139095040
        %v1185 = vshrl.u32 %v1184, 23
        %v1186 = vsub.s32 %v1185, 127
        %v1187 = vand.u32 2147483647, %v1163
        %v1188 = vand.u32 %v1187, 8388607
        %v1189 = vor.u32 %v1188, 8388608
        %v1190 = vsub.s32 0, %v1189
        %v1191 = vadd.s32 %v1186, 1
        %vm1192 = vcmp.gt.s32.totalorder %v1191, 0
        %v1193 = vsel %vm1192, %v1191, 0
        %v1194 = vshrl.u32 %v1193, 5
        %v1195 = vand.u32 %v1193, 31
        %v1196 = vsub.s32 32, %v1195
        %v1197 = vshrl.u32 683565275, %v1196
        %v1198 = vshll.u32 683565275, %v1195
        %v1199 = vshrl.u32 2475754826, %v1196
        %v1200 = vor.u32 %v1198, %v1199
        %v1201 = vshll.u32 2475754826, %v1195
        %v1202 = vshrl.u32 2131351028, %v1196
        %v1203 = vor.u32 %v1201, %v1202
        %v1204 = vshll.u32 2131351028, %v1195
        %v1205 = vshrl.u32 2102212464, %v1196
        %v1206 = vor.u32 %v1204, %v1205
        %v1207 = vshll.u32 2102212464, %v1195
        %v1208 = vshrl.u32 920167782, %v1196
        %v1209 = vor.u32 %v1207, %v1208
        %v1210 = vshll.u32 920167782, %v1195
        %v1211 = vshrl.u32 1326507024, %v1196
        %v1212 = vor.u32 %v1210, %v1211
        %vm1213 = vcmp.lt.s32.totalorder %v1194, 1
        %vm1214 = vcmp.lt.s32.totalorder %v1194, 2
        %vm1215 = vcmp.lt.s32.totalorder %v1194, 3
        %vm1216 = vcmp.lt.s32.totalorder %v1194, 4
        %v1217 = vsel %vm1213, %v1197, %v1200
        %v1218 = vsel %vm1216, %v1206, 2102212464
        %v1219 = vsel %vm1215, %v1203, %v1218
        %v1220 = vsel %vm1214, %v1217, %v1219
        %v1221 = vsel %vm1213, %v1200, %v1203
        %v1222 = vsel %vm1216, %v1209, 920167782
        %v1223 = vsel %vm1215, %v1206, %v1222
        %v1224 = vsel %vm1214, %v1221, %v1223
        %v1225 = vsel %vm1213, %v1203, %v1206
        %v1226 = vsel %vm1216, %v1212, 1326507024
        %v1227 = vsel %vm1215, %v1209, %v1226
        %v1228 = vsel %vm1214, %v1225, %v1227
        %v1229 = vshll.u32 %v1189, 8
        %v1230 = vmul.u32.u64.compose %v1229, %v1228
        %v1231 = vextract.low.u32 %v1230
        %v1232 = vextract.high.u32 %v1230
        %v1233 = vmul.u32.u64.compose %v1229, %v1224
        %v1234 = vextract.low.u32 %v1233
        %v1235 = vextract.high.u32 %v1233
        %v1236 = vmul.u32 %v1229, %v1220
        %v1237 = vadd.s32 %v1232, %v1234
        %vm1238 = vc.u32 %v1232, %v1234
        %v1239 = vadd.s32 %v1235, 1
        %v1240 = vsel %vm1238, %v1239, %v1235
        %v1241 = vadd.s32 %v1236, %v1240
        %v1242 = vadd.s32 %v1241, 536870912
        %v1243 = vshrl.u32 %v1242, 30
        %v1244 = vshll.u32 %v1243, 30
        %v1245 = vsub.s32 %v1241, %v1244
        %vm1246 = vcmp.lt.s32.totalorder %v1245, 0
        %v1247 = vsub.s32 0, %v1245
        %v1248 = vsel %vm1246, %v1247, %v1245
        %v1249 = vclz %v1248
        %v1250 = vsub.s32 %v1249, 2
        %vm1251 = vcmp.gt.s32.totalorder 0, %v1250
        %v1252 = vsel %vm1251, 0, %v1250
        %v1253 = vsub.s32 32, %v1252
        %v1254 = vshll.u32 %v1245, %v1252
        %v1255 = vshrl.u32 %v1237, %v1253
        %v1256 = vor.u32 %v1254, %v1255
        %v1257 = vsub.s32 4294967266, %v1252
        %v1258 = vadd.s32 %v1257, 127
        %v1259 = vshll.u32 %v1258, 23
        %v1260 = vor.u32 4788187, %v1259
        %v1261 = vand.u32 2147483647, %v1260
        %v1263 = vcvt.s32.f32 %v1256
        %v1264 = vmul.f32 %v1263, %v1261
        %v1265 = vxor.u32 %v1264, 2147483648
        %v1266 = vsel %vm1183, %v1265, %v1264
        %v1267 = vsub.s32 4, %v1243
        %v1268 = vsel %vm1183, %v1267, %v1243
        %v1269 = vsel %vm1182, %v1163, %v1266
        %v1270 = vsel %vm1182, 0, %v1268
        %v1271 = vcosq.f32.pop %v1269
        %v1272 = vsinq.f32.pop %v1269
        %vm1273 = vweird.f32 %v1163
        %v1274 = vadd.s32 %v1270, 3
        %v1275 = vand.u32 %v1274, 3
        %vm1276 = vcmp.lt.s32.totalorder %v1275, 2
        %vm1277 = vcmp.eq.s32.totalorder %v1275, 0
        %v1278 = vxor.u32 %v1272, 2147483648
        %v1279 = vsel %vm1277, %v1271, %v1278
        %vm1280 = vcmp.eq.s32.totalorder %v1275, 2
        %v1281 = vxor.u32 %v1271, 2147483648
        %v1282 = vsel %vm1280, %v1281, %v1272
        %v1283 = vsel %vm1276, %v1279, %v1282
        %v1284 = vsel %vm1273, nan, %v1283
        %v1285 = vand.u32 2147483647, %v1168
        %vm1286 = vcmp.le.f32.partialorder %v1285, 0.7853982
        %vm1287 = vcmp.lt.s32.totalorder %v1168, 0
        %v1288 = vand.u32 %v1168, 2139095040
        %v1289 = vshrl.u32 %v1288, 23
        %v1290 = vsub.s32 %v1289, 127
        %v1291 = vand.u32 2147483647, %v1168
        %v1292 = vand.u32 %v1291, 8388607
        %v1293 = vor.u32 %v1292, 8388608
        %v1294 = vsub.s32 0, %v1293
        %v1295 = vadd.s32 %v1290, 1
        %vm1296 = vcmp.gt.s32.totalorder %v1295, 0
        %v1297 = vsel %vm1296, %v1295, 0
        %v1298 = vshrl.u32 %v1297, 5
        %v1299 = vand.u32 %v1297, 31
        %v1300 = vsub.s32 32, %v1299
        %v1301 = vshrl.u32 683565275, %v1300
        %v1302 = vshll.u32 683565275, %v1299
        %v1303 = vshrl.u32 2475754826, %v1300
        %v1304 = vor.u32 %v1302, %v1303
        %v1305 = vshll.u32 2475754826, %v1299
        %v1306 = vshrl.u32 2131351028, %v1300
        %v1307 = vor.u32 %v1305, %v1306
        %v1308 = vshll.u32 2131351028, %v1299
        %v1309 = vshrl.u32 2102212464, %v1300
        %v1310 = vor.u32 %v1308, %v1309
        %v1311 = vshll.u32 2102212464, %v1299
        %v1312 = vshrl.u32 920167782, %v1300
        %v1313 = vor.u32 %v1311, %v1312
        %v1314 = vshll.u32 920167782, %v1299
        %v1315 = vshrl.u32 1326507024, %v1300
        %v1316 = vor.u32 %v1314, %v1315
        %vm1317 = vcmp.lt.s32.totalorder %v1298, 1
        %vm1318 = vcmp.lt.s32.totalorder %v1298, 2
        %vm1319 = vcmp.lt.s32.totalorder %v1298, 3
        %vm1320 = vcmp.lt.s32.totalorder %v1298, 4
        %v1321 = vsel %vm1317, %v1301, %v1304
        %v1322 = vsel %vm1320, %v1310, 2102212464
        %v1323 = vsel %vm1319, %v1307, %v1322
        %v1324 = vsel %vm1318, %v1321, %v1323
        %v1325 = vsel %vm1317, %v1304, %v1307
        %v1326 = vsel %vm1320, %v1313, 920167782
        %v1327 = vsel %vm1319, %v1310, %v1326
        %v1328 = vsel %vm1318, %v1325, %v1327
        %v1329 = vsel %vm1317, %v1307, %v1310
        %v1330 = vsel %vm1320, %v1316, 1326507024
        %v1331 = vsel %vm1319, %v1313, %v1330
        %v1332 = vsel %vm1318, %v1329, %v1331
        %v1333 = vshll.u32 %v1293, 8
        %v1334 = vmul.u32.u64.compose %v1333, %v1332
        %v1335 = vextract.low.u32 %v1334
        %v1336 = vextract.high.u32 %v1334
        %v1337 = vmul.u32.u64.compose %v1333, %v1328
        %v1338 = vextract.low.u32 %v1337
        %v1339 = vextract.high.u32 %v1337
        %v1340 = vmul.u32 %v1333, %v1324
        %v1341 = vadd.s32 %v1336, %v1338
        %vm1342 = vc.u32 %v1336, %v1338
        %v1343 = vadd.s32 %v1339, 1
        %v1344 = vsel %vm1342, %v1343, %v1339
        %v1345 = vadd.s32 %v1340, %v1344
        %v1346 = vadd.s32 %v1345, 536870912
        %v1347 = vshrl.u32 %v1346, 30
        %v1348 = vshll.u32 %v1347, 30
        %v1349 = vsub.s32 %v1345, %v1348
        %vm1350 = vcmp.lt.s32.totalorder %v1349, 0
        %v1351 = vsub.s32 0, %v1349
        %v1352 = vsel %vm1350, %v1351, %v1349
        %v1353 = vclz %v1352
        %v1354 = vsub.s32 %v1353, 2
        %vm1355 = vcmp.gt.s32.totalorder 0, %v1354
        %v1356 = vsel %vm1355, 0, %v1354
        %v1357 = vsub.s32 32, %v1356
        %v1358 = vshll.u32 %v1349, %v1356
        %v1359 = vshrl.u32 %v1341, %v1357
        %v1360 = vor.u32 %v1358, %v1359
        %v1361 = vsub.s32 4294967266, %v1356
        %v1362 = vadd.s32 %v1361, 127
        %v1363 = vshll.u32 %v1362, 23
        %v1364 = vor.u32 4788187, %v1363
        %v1365 = vand.u32 2147483647, %v1364
        %v1367 = vcvt.s32.f32 %v1360
        %v1368 = vmul.f32 %v1367, %v1365
        %v1369 = vxor.u32 %v1368, 2147483648
        %v1370 = vsel %vm1287, %v1369, %v1368
        %v1371 = vsub.s32 4, %v1347
        %v1372 = vsel %vm1287, %v1371, %v1347
        %v1373 = vsel %vm1286, %v1168, %v1370
        %v1374 = vsel %vm1286, 0, %v1372
        %v1375 = vcosq.f32.pop %v1373
        %v1376 = vsinq.f32.pop %v1373
        %vm1377 = vweird.f32 %v1168
        %v1378 = vadd.s32 %v1374, 3
        %v1379 = vand.u32 %v1378, 3
        %vm1380 = vcmp.lt.s32.totalorder %v1379, 2
        %vm1381 = vcmp.eq.s32.totalorder %v1379, 0
        %v1382 = vxor.u32 %v1376, 2147483648
        %v1383 = vsel %vm1381, %v1375, %v1382
        %vm1384 = vcmp.eq.s32.totalorder %v1379, 2
        %v1385 = vxor.u32 %v1375, 2147483648
        %v1386 = vsel %vm1384, %v1385, %v1376
        %v1387 = vsel %vm1380, %v1383, %v1386
        %v1388 = vsel %vm1377, nan, %v1387
        %v1389 = vand.u32 2147483647, %v1173
        %vm1390 = vcmp.le.f32.partialorder %v1389, 0.7853982
        %vm1391 = vcmp.lt.s32.totalorder %v1173, 0
        %v1392 = vand.u32 %v1173, 2139095040
        %v1393 = vshrl.u32 %v1392, 23
        %v1394 = vsub.s32 %v1393, 127
        %v1395 = vand.u32 2147483647, %v1173
        %v1396 = vand.u32 %v1395, 8388607
        %v1397 = vor.u32 %v1396, 8388608
        %v1398 = vsub.s32 0, %v1397
        %v1399 = vadd.s32 %v1394, 1
        %vm1400 = vcmp.gt.s32.totalorder %v1399, 0
        %v1401 = vsel %vm1400, %v1399, 0
        %v1402 = vshrl.u32 %v1401, 5
        %v1403 = vand.u32 %v1401, 31
        %v1404 = vsub.s32 32, %v1403
        %v1405 = vshrl.u32 683565275, %v1404
        %v1406 = vshll.u32 683565275, %v1403
        %v1407 = vshrl.u32 2475754826, %v1404
        %v1408 = vor.u32 %v1406, %v1407
        %v1409 = vshll.u32 2475754826, %v1403
        %v1410 = vshrl.u32 2131351028, %v1404
        %v1411 = vor.u32 %v1409, %v1410
        %v1412 = vshll.u32 2131351028, %v1403
        %v1413 = vshrl.u32 2102212464, %v1404
        %v1414 = vor.u32 %v1412, %v1413
        %v1415 = vshll.u32 2102212464, %v1403
        %v1416 = vshrl.u32 920167782, %v1404
        %v1417 = vor.u32 %v1415, %v1416
        %v1418 = vshll.u32 920167782, %v1403
        %v1419 = vshrl.u32 1326507024, %v1404
        %v1420 = vor.u32 %v1418, %v1419
        %vm1421 = vcmp.lt.s32.totalorder %v1402, 1
        %vm1422 = vcmp.lt.s32.totalorder %v1402, 2
        %vm1423 = vcmp.lt.s32.totalorder %v1402, 3
        %vm1424 = vcmp.lt.s32.totalorder %v1402, 4
        %v1425 = vsel %vm1421, %v1405, %v1408
        %v1426 = vsel %vm1424, %v1414, 2102212464
        %v1427 = vsel %vm1423, %v1411, %v1426
        %v1428 = vsel %vm1422, %v1425, %v1427
        %v1429 = vsel %vm1421, %v1408, %v1411
        %v1430 = vsel %vm1424, %v1417, 920167782
        %v1431 = vsel %vm1423, %v1414, %v1430
        %v1432 = vsel %vm1422, %v1429, %v1431
        %v1433 = vsel %vm1421, %v1411, %v1414
        %v1434 = vsel %vm1424, %v1420, 1326507024
        %v1435 = vsel %vm1423, %v1417, %v1434
        %v1436 = vsel %vm1422, %v1433, %v1435
        %v1437 = vshll.u32 %v1397, 8
        %v1438 = vmul.u32.u64.compose %v1437, %v1436
        %v1439 = vextract.low.u32 %v1438
        %v1440 = vextract.high.u32 %v1438
        %v1441 = vmul.u32.u64.compose %v1437, %v1432
        %v1442 = vextract.low.u32 %v1441
        %v1443 = vextract.high.u32 %v1441
        %v1444 = vmul.u32 %v1437, %v1428
        %v1445 = vadd.s32 %v1440, %v1442
        %vm1446 = vc.u32 %v1440, %v1442
        %v1447 = vadd.s32 %v1443, 1
        %v1448 = vsel %vm1446, %v1447, %v1443
        %v1449 = vadd.s32 %v1444, %v1448
        %v1450 = vadd.s32 %v1449, 536870912
        %v1451 = vshrl.u32 %v1450, 30
        %v1452 = vshll.u32 %v1451, 30
        %v1453 = vsub.s32 %v1449, %v1452
        %vm1454 = vcmp.lt.s32.totalorder %v1453, 0
        %v1455 = vsub.s32 0, %v1453
        %v1456 = vsel %vm1454, %v1455, %v1453
        %v1457 = vclz %v1456
        %v1458 = vsub.s32 %v1457, 2
        %vm1459 = vcmp.gt.s32.totalorder 0, %v1458
        %v1460 = vsel %vm1459, 0, %v1458
        %v1461 = vsub.s32 32, %v1460
        %v1462 = vshll.u32 %v1453, %v1460
        %v1463 = vshrl.u32 %v1445, %v1461
        %v1464 = vor.u32 %v1462, %v1463
        %v1465 = vsub.s32 4294967266, %v1460
        %v1466 = vadd.s32 %v1465, 127
        %v1467 = vshll.u32 %v1466, 23
        %v1468 = vor.u32 4788187, %v1467
        %v1469 = vand.u32 2147483647, %v1468
        %v1471 = vcvt.s32.f32 %v1464
        %v1472 = vmul.f32 %v1471, %v1469
        %v1473 = vxor.u32 %v1472, 2147483648
        %v1474 = vsel %vm1391, %v1473, %v1472
        %v1475 = vsub.s32 4, %v1451
        %v1476 = vsel %vm1391, %v1475, %v1451
        %v1477 = vsel %vm1390, %v1173, %v1474
        %v1478 = vsel %vm1390, 0, %v1476
        %v1479 = vcosq.f32.pop %v1477
        %v1480 = vsinq.f32.pop %v1477
        %vm1481 = vweird.f32 %v1173
        %v1482 = vadd.s32 %v1478, 3
        %v1483 = vand.u32 %v1482, 3
        %vm1484 = vcmp.lt.s32.totalorder %v1483, 2
        %vm1485 = vcmp.eq.s32.totalorder %v1483, 0
        %v1486 = vxor.u32 %v1480, 2147483648
        %v1487 = vsel %vm1485, %v1479, %v1486
        %vm1488 = vcmp.eq.s32.totalorder %v1483, 2
        %v1489 = vxor.u32 %v1479, 2147483648
        %v1490 = vsel %vm1488, %v1489, %v1480
        %v1491 = vsel %vm1484, %v1487, %v1490
        %v1492 = vsel %vm1481, nan, %v1491
        %v1493 = vand.u32 2147483647, %v1178
        %vm1494 = vcmp.le.f32.partialorder %v1493, 0.7853982
        %vm1495 = vcmp.lt.s32.totalorder %v1178, 0
        %v1496 = vand.u32 %v1178, 2139095040
        %v1497 = vshrl.u32 %v1496, 23
        %v1498 = vsub.s32 %v1497, 127
        %v1499 = vand.u32 2147483647, %v1178
        %v1500 = vand.u32 %v1499, 8388607
        %v1501 = vor.u32 %v1500, 8388608
        %v1502 = vsub.s32 0, %v1501
        %v1503 = vadd.s32 %v1498, 1
        %vm1504 = vcmp.gt.s32.totalorder %v1503, 0
        %v1505 = vsel %vm1504, %v1503, 0
        %v1506 = vshrl.u32 %v1505, 5
        %v1507 = vand.u32 %v1505, 31
        %v1508 = vsub.s32 32, %v1507
        %v1509 = vshrl.u32 683565275, %v1508
        %v1510 = vshll.u32 683565275, %v1507
        %v1511 = vshrl.u32 2475754826, %v1508
        %v1512 = vor.u32 %v1510, %v1511
        %v1513 = vshll.u32 2475754826, %v1507
        %v1514 = vshrl.u32 2131351028, %v1508
        %v1515 = vor.u32 %v1513, %v1514
        %v1516 = vshll.u32 2131351028, %v1507
        %v1517 = vshrl.u32 2102212464, %v1508
        %v1518 = vor.u32 %v1516, %v1517
        %v1519 = vshll.u32 2102212464, %v1507
        %v1520 = vshrl.u32 920167782, %v1508
        %v1521 = vor.u32 %v1519, %v1520
        %v1522 = vshll.u32 920167782, %v1507
        %v1523 = vshrl.u32 1326507024, %v1508
        %v1524 = vor.u32 %v1522, %v1523
        %vm1525 = vcmp.lt.s32.totalorder %v1506, 1
        %vm1526 = vcmp.lt.s32.totalorder %v1506, 2
        %vm1527 = vcmp.lt.s32.totalorder %v1506, 3
        %vm1528 = vcmp.lt.s32.totalorder %v1506, 4
        %v1529 = vsel %vm1525, %v1509, %v1512
        %v1530 = vsel %vm1528, %v1518, 2102212464
        %v1531 = vsel %vm1527, %v1515, %v1530
        %v1532 = vsel %vm1526, %v1529, %v1531
        %v1533 = vsel %vm1525, %v1512, %v1515
        %v1534 = vsel %vm1528, %v1521, 920167782
        %v1535 = vsel %vm1527, %v1518, %v1534
        %v1536 = vsel %vm1526, %v1533, %v1535
        %v1537 = vsel %vm1525, %v1515, %v1518
        %v1538 = vsel %vm1528, %v1524, 1326507024
        %v1539 = vsel %vm1527, %v1521, %v1538
        %v1540 = vsel %vm1526, %v1537, %v1539
        %v1541 = vshll.u32 %v1501, 8
        %v1542 = vmul.u32.u64.compose %v1541, %v1540
        %v1543 = vextract.low.u32 %v1542
        %v1544 = vextract.high.u32 %v1542
        %v1545 = vmul.u32.u64.compose %v1541, %v1536
        %v1546 = vextract.low.u32 %v1545
        %v1547 = vextract.high.u32 %v1545
        %v1548 = vmul.u32 %v1541, %v1532
        %v1549 = vadd.s32 %v1544, %v1546
        %vm1550 = vc.u32 %v1544, %v1546
        %v1551 = vadd.s32 %v1547, 1
        %v1552 = vsel %vm1550, %v1551, %v1547
        %v1553 = vadd.s32 %v1548, %v1552
        %v1554 = vadd.s32 %v1553, 536870912
        %v1555 = vshrl.u32 %v1554, 30
        %v1556 = vshll.u32 %v1555, 30
        %v1557 = vsub.s32 %v1553, %v1556
        %vm1558 = vcmp.lt.s32.totalorder %v1557, 0
        %v1559 = vsub.s32 0, %v1557
        %v1560 = vsel %vm1558, %v1559, %v1557
        %v1561 = vclz %v1560
        %v1562 = vsub.s32 %v1561, 2
        %vm1563 = vcmp.gt.s32.totalorder 0, %v1562
        %v1564 = vsel %vm1563, 0, %v1562
        %v1565 = vsub.s32 32, %v1564
        %v1566 = vshll.u32 %v1557, %v1564
        %v1567 = vshrl.u32 %v1549, %v1565
        %v1568 = vor.u32 %v1566, %v1567
        %v1569 = vsub.s32 4294967266, %v1564
        %v1570 = vadd.s32 %v1569, 127
        %v1571 = vshll.u32 %v1570, 23
        %v1572 = vor.u32 4788187, %v1571
        %v1573 = vand.u32 2147483647, %v1572
        %v1575 = vcvt.s32.f32 %v1568
        %v1576 = vmul.f32 %v1575, %v1573
        %v1577 = vxor.u32 %v1576, 2147483648
        %v1578 = vsel %vm1495, %v1577, %v1576
        %v1579 = vsub.s32 4, %v1555
        %v1580 = vsel %vm1495, %v1579, %v1555
        %v1581 = vsel %vm1494, %v1178, %v1578
        %v1582 = vsel %vm1494, 0, %v1580
        %v1583 = vcosq.f32.pop %v1581
        %v1584 = vsinq.f32.pop %v1581
        %vm1585 = vweird.f32 %v1178
        %v1586 = vadd.s32 %v1582, 3
        %v1587 = vand.u32 %v1586, 3
        %vm1588 = vcmp.lt.s32.totalorder %v1587, 2
        %vm1589 = vcmp.eq.s32.totalorder %v1587, 0
        %v1590 = vxor.u32 %v1584, 2147483648
        %v1591 = vsel %vm1589, %v1583, %v1590
        %vm1592 = vcmp.eq.s32.totalorder %v1587, 2
        %v1593 = vxor.u32 %v1583, 2147483648
        %v1594 = vsel %vm1592, %v1593, %v1584
        %v1595 = vsel %vm1588, %v1591, %v1594
        %v1596 = vsel %vm1585, nan, %v1595
        %v1597 = vld [vmem:[%s7] sm:$0xff]
        %v1598 = vld [vmem:[%s7 + $0x8] sm:$0xff]
        %v1599 = vld [vmem:[%s7 + $0x10] sm:$0xff]
        %v1600 = vld [vmem:[%s7 + $0x18] sm:$0xff]
        %v1601 = vld [vmem:[%s8] sm:$0xff]
        %v1602 = vld [vmem:[%s8 + $0x8] sm:$0xff]
        %v1603 = vld [vmem:[%s8 + $0x10] sm:$0xff]
        %v1604 = vld [vmem:[%s8 + $0x18] sm:$0xff]
        %1606 = vset.pattern.permute.xlu0 0
        %1607 = vperm.xlu0 %1606, %v1601
        %v1608 = vpop.permute.xlu0 %1607
        %1611 = vset.pattern.permute.xlu0 0
        %1612 = vperm.xlu0 %1611, %v1602
        %v1613 = vpop.permute.xlu0 %1612
        %1616 = vset.pattern.permute.xlu0 0
        %1617 = vperm.xlu0 %1616, %v1603
        %v1618 = vpop.permute.xlu0 %1617
        %1621 = vset.pattern.permute.xlu0 0
        %1622 = vperm.xlu0 %1621, %v1604
        %v1623 = vpop.permute.xlu0 %1622
        %v1626 = vsel %vm1083, %v1597, 0
        %v1629 = vsel %vm1083, %v1598, 0
        %v1632 = vsel %vm1083, %v1599, 0
        %v1635 = vsel %vm1083, %v1600, 0
        %1637 = vmatprep.subr.mxu0 0.0
        %1638 = vmatpush1.msra.mxu0 %v1284
        %1639 = vmatprep.subr.mxu0 0.0
        %1640 = vmatpush1.msra.mxu0 %v1388
        %1641 = vmatprep.subr.mxu0 0.0
        %1642 = vmatpush1.msra.mxu0 %v1492
        %1643 = vmatprep.subr.mxu0 0.0
        %1644 = vmatpush1.msra.mxu0 %v1596
        %1645 = vmatprep.subr.mxu0 0.0
        %1646 = vmatpush1.msra.mxu0 0.0
        %1647 = vmatprep.subr.mxu0 0.0
        %1648 = vmatpush1.msra.mxu0 0.0
        %1649 = vmatprep.subr.mxu0 0.0
        %1650 = vmatpush1.msra.mxu0 0.0
        %1651 = vmatprep.subr.mxu0 0.0
        %1652 = vmatpush1.msra.mxu0 0.0
        %1653 = vmatprep.subr.mxu0 0.0
        %1654 = vmatpush1.msra.mxu0 0.0
        %1655 = vmatprep.subr.mxu0 0.0
        %1656 = vmatpush1.msra.mxu0 0.0
        %1657 = vmatprep.subr.mxu0 0.0
        %1658 = vmatpush1.msra.mxu0 0.0
        %1659 = vmatprep.subr.mxu0 0.0
        %1660 = vmatpush1.msra.mxu0 0.0
        %1661 = vmatprep.subr.mxu0 0.0
        %1662 = vmatpush1.msra.mxu0 0.0
        %1663 = vmatprep.subr.mxu0 0.0
        %1664 = vmatpush1.msra.mxu0 0.0
        %1665 = vmatprep.subr.mxu0 0.0
        %1666 = vmatpush1.msra.mxu0 0.0
        %1667 = vmatprep.subr.mxu0 0.0
        %1668 = vmatpush1.msra.mxu0 0.0
        %1669 = vmatprep.subr.mxu0 0.0
        %1670 = vmatpush1.msra.mxu0 0.0
        %1671 = vmatprep.subr.mxu0 0.0
        %1672 = vmatpush1.msra.mxu0 0.0
        %1673 = vmatprep.subr.mxu0 0.0
        %1674 = vmatpush1.msra.mxu0 0.0
        %1675 = vmatprep.subr.mxu0 0.0
        %1676 = vmatpush1.msra.mxu0 0.0
        %1677 = vmatprep.subr.mxu0 0.0
        %1678 = vmatpush1.msra.mxu0 0.0
        %1679 = vmatprep.subr.mxu0 0.0
        %1680 = vmatpush1.msra.mxu0 0.0
        %1681 = vmatprep.subr.mxu0 0.0
        %1682 = vmatpush1.msra.mxu0 0.0
        %1683 = vmatprep.subr.mxu0 0.0
        %1684 = vmatpush1.msra.mxu0 0.0
        %1685 = vmatprep.subr.mxu0 0.0
        %1686 = vmatpush1.msra.mxu0 0.0
        %1687 = vmatprep.subr.mxu0 0.0
        %1688 = vmatpush1.msra.mxu0 0.0
        %1689 = vmatprep.subr.mxu0 0.0
        %1690 = vmatpush1.msra.mxu0 0.0
        %1691 = vmatprep.subr.mxu0 0.0
        %1692 = vmatpush1.msra.mxu0 0.0
        %1693 = vmatprep.subr.mxu0 0.0
        %1694 = vmatpush1.msra.mxu0 0.0
        %1695 = vmatprep.subr.mxu0 0.0
        %1696 = vmatpush1.msra.mxu0 0.0
        %1697 = vmatprep.subr.mxu0 0.0
        %1698 = vmatpush1.msra.mxu0 0.0
        %1699 = vmatprep.subr.mxu0 0.0
        %1700 = vmatpush1.msra.mxu0 0.0
        %1701 = vmatprep.mubr.f32.mxu0 0.0
        %1702 = vmatmul.mubr.f32.gmra.mrb[0].mxu0 %v1626
        %v1703 = vpop.f32.mrb[0].mxu0
        %v1704 = vadd.f32 %v1608, %v1703
        %v1705 = vpop.f32.mrb[0].mxu0
        %1706 = vmatprep.mubr.f32.mxu0 0.0
        %1707 = vmatmul.mubr.f32.gmra.mrb[0].mxu0 %v1629
        %v1708 = vpop.f32.mrb[0].mxu0
        %v1709 = vadd.f32 %v1613, %v1708
        %v1710 = vpop.f32.mrb[0].mxu0
        %1711 = vmatprep.mubr.f32.mxu0 0.0
        %1712 = vmatmul.mubr.f32.gmra.mrb[0].mxu0 %v1632
        %v1713 = vpop.f32.mrb[0].mxu0
        %v1714 = vadd.f32 %v1618, %v1713
        %v1715 = vpop.f32.mrb[0].mxu0
        %1716 = vmatprep.mubr.f32.mxu0 0.0
        %1717 = vmatmul.mubr.f32.gmra.mrb[0].mxu0 %v1635
        %v1718 = vpop.f32.mrb[0].mxu0
        %v1719 = vadd.f32 %v1623, %v1718
        %v1720 = vpop.f32.mrb[0].mxu0
        %1721 = vdwg.mxu0
        %v1722 = vand.u32 2147483647, %v1704
        %vm1723 = vcmp.le.f32.partialorder %v1722, 0.7853982
        %vm1724 = vcmp.lt.s32.totalorder %v1704, 0
        %v1725 = vand.u32 %v1704, 2139095040
        %v1726 = vshrl.u32 %v1725, 23
        %v1727 = vsub.s32 %v1726, 127
        %v1728 = vand.u32 2147483647, %v1704
        %v1729 = vand.u32 %v1728, 8388607
        %v1730 = vor.u32 %v1729, 8388608
        %v1731 = vsub.s32 0, %v1730
        %v1732 = vadd.s32 %v1727, 1
        %vm1733 = vcmp.gt.s32.totalorder %v1732, 0
        %v1734 = vsel %vm1733, %v1732, 0
        %v1735 = vshrl.u32 %v1734, 5
        %v1736 = vand.u32 %v1734, 31
        %v1737 = vsub.s32 32, %v1736
        %v1738 = vshrl.u32 683565275, %v1737
        %v1739 = vshll.u32 683565275, %v1736
        %v1740 = vshrl.u32 2475754826, %v1737
        %v1741 = vor.u32 %v1739, %v1740
        %v1742 = vshll.u32 2475754826, %v1736
        %v1743 = vshrl.u32 2131351028, %v1737
        %v1744 = vor.u32 %v1742, %v1743
        %v1745 = vshll.u32 2131351028, %v1736
        %v1746 = vshrl.u32 2102212464, %v1737
        %v1747 = vor.u32 %v1745, %v1746
        %v1748 = vshll.u32 2102212464, %v1736
        %v1749 = vshrl.u32 920167782, %v1737
        %v1750 = vor.u32 %v1748, %v1749
        %v1751 = vshll.u32 920167782, %v1736
        %v1752 = vshrl.u32 1326507024, %v1737
        %v1753 = vor.u32 %v1751, %v1752
        %vm1754 = vcmp.lt.s32.totalorder %v1735, 1
        %vm1755 = vcmp.lt.s32.totalorder %v1735, 2
        %vm1756 = vcmp.lt.s32.totalorder %v1735, 3
        %vm1757 = vcmp.lt.s32.totalorder %v1735, 4
        %v1758 = vsel %vm1754, %v1738, %v1741
        %v1759 = vsel %vm1757, %v1747, 2102212464
        %v1760 = vsel %vm1756, %v1744, %v1759
        %v1761 = vsel %vm1755, %v1758, %v1760
        %v1762 = vsel %vm1754, %v1741, %v1744
        %v1763 = vsel %vm1757, %v1750, 920167782
        %v1764 = vsel %vm1756, %v1747, %v1763
        %v1765 = vsel %vm1755, %v1762, %v1764
        %v1766 = vsel %vm1754, %v1744, %v1747
        %v1767 = vsel %vm1757, %v1753, 1326507024
        %v1768 = vsel %vm1756, %v1750, %v1767
        %v1769 = vsel %vm1755, %v1766, %v1768
        %v1770 = vshll.u32 %v1730, 8
        %v1771 = vmul.u32.u64.compose %v1770, %v1769
        %v1772 = vextract.low.u32 %v1771
        %v1773 = vextract.high.u32 %v1771
        %v1774 = vmul.u32.u64.compose %v1770, %v1765
        %v1775 = vextract.low.u32 %v1774
        %v1776 = vextract.high.u32 %v1774
        %v1777 = vmul.u32 %v1770, %v1761
        %v1778 = vadd.s32 %v1773, %v1775
        %vm1779 = vc.u32 %v1773, %v1775
        %v1780 = vadd.s32 %v1776, 1
        %v1781 = vsel %vm1779, %v1780, %v1776
        %v1782 = vadd.s32 %v1777, %v1781
        %v1783 = vadd.s32 %v1782, 536870912
        %v1784 = vshrl.u32 %v1783, 30
        %v1785 = vshll.u32 %v1784, 30
        %v1786 = vsub.s32 %v1782, %v1785
        %vm1787 = vcmp.lt.s32.totalorder %v1786, 0
        %v1788 = vsub.s32 0, %v1786
        %v1789 = vsel %vm1787, %v1788, %v1786
        %v1790 = vclz %v1789
        %v1791 = vsub.s32 %v1790, 2
        %vm1792 = vcmp.gt.s32.totalorder 0, %v1791
        %v1793 = vsel %vm1792, 0, %v1791
        %v1794 = vsub.s32 32, %v1793
        %v1795 = vshll.u32 %v1786, %v1793
        %v1796 = vshrl.u32 %v1778, %v1794
        %v1797 = vor.u32 %v1795, %v1796
        %v1798 = vsub.s32 4294967266, %v1793
        %v1799 = vadd.s32 %v1798, 127
        %v1800 = vshll.u32 %v1799, 23
        %v1801 = vor.u32 4788187, %v1800
        %v1802 = vand.u32 2147483647, %v1801
        %v1804 = vcvt.s32.f32 %v1797
        %v1805 = vmul.f32 %v1804, %v1802
        %v1806 = vxor.u32 %v1805, 2147483648
        %v1807 = vsel %vm1724, %v1806, %v1805
        %v1808 = vsub.s32 4, %v1784
        %v1809 = vsel %vm1724, %v1808, %v1784
        %v1810 = vsel %vm1723, %v1704, %v1807
        %v1811 = vsel %vm1723, 0, %v1809
        %v1812 = vcosq.f32.pop %v1810
        %v1813 = vsinq.f32.pop %v1810
        %vm1814 = vweird.f32 %v1704
        %v1815 = vadd.s32 %v1811, 3
        %v1816 = vand.u32 %v1815, 3
        %vm1817 = vcmp.lt.s32.totalorder %v1816, 2
        %vm1818 = vcmp.eq.s32.totalorder %v1816, 0
        %v1819 = vxor.u32 %v1813, 2147483648
        %v1820 = vsel %vm1818, %v1812, %v1819
        %vm1821 = vcmp.eq.s32.totalorder %v1816, 2
        %v1822 = vxor.u32 %v1812, 2147483648
        %v1823 = vsel %vm1821, %v1822, %v1813
        %v1824 = vsel %vm1817, %v1820, %v1823
        %v1825 = vsel %vm1814, nan, %v1824
        %v1826 = vand.u32 2147483647, %v1709
        %vm1827 = vcmp.le.f32.partialorder %v1826, 0.7853982
        %vm1828 = vcmp.lt.s32.totalorder %v1709, 0
        %v1829 = vand.u32 %v1709, 2139095040
        %v1830 = vshrl.u32 %v1829, 23
        %v1831 = vsub.s32 %v1830, 127
        %v1832 = vand.u32 2147483647, %v1709
        %v1833 = vand.u32 %v1832, 8388607
        %v1834 = vor.u32 %v1833, 8388608
        %v1835 = vsub.s32 0, %v1834
        %v1836 = vadd.s32 %v1831, 1
        %vm1837 = vcmp.gt.s32.totalorder %v1836, 0
        %v1838 = vsel %vm1837, %v1836, 0
        %v1839 = vshrl.u32 %v1838, 5
        %v1840 = vand.u32 %v1838, 31
        %v1841 = vsub.s32 32, %v1840
        %v1842 = vshrl.u32 683565275, %v1841
        %v1843 = vshll.u32 683565275, %v1840
        %v1844 = vshrl.u32 2475754826, %v1841
        %v1845 = vor.u32 %v1843, %v1844
        %v1846 = vshll.u32 2475754826, %v1840
        %v1847 = vshrl.u32 2131351028, %v1841
        %v1848 = vor.u32 %v1846, %v1847
        %v1849 = vshll.u32 2131351028, %v1840
        %v1850 = vshrl.u32 2102212464, %v1841
        %v1851 = vor.u32 %v1849, %v1850
        %v1852 = vshll.u32 2102212464, %v1840
        %v1853 = vshrl.u32 920167782, %v1841
        %v1854 = vor.u32 %v1852, %v1853
        %v1855 = vshll.u32 920167782, %v1840
        %v1856 = vshrl.u32 1326507024, %v1841
        %v1857 = vor.u32 %v1855, %v1856
        %vm1858 = vcmp.lt.s32.totalorder %v1839, 1
        %vm1859 = vcmp.lt.s32.totalorder %v1839, 2
        %vm1860 = vcmp.lt.s32.totalorder %v1839, 3
        %vm1861 = vcmp.lt.s32.totalorder %v1839, 4
        %v1862 = vsel %vm1858, %v1842, %v1845
        %v1863 = vsel %vm1861, %v1851, 2102212464
        %v1864 = vsel %vm1860, %v1848, %v1863
        %v1865 = vsel %vm1859, %v1862, %v1864
        %v1866 = vsel %vm1858, %v1845, %v1848
        %v1867 = vsel %vm1861, %v1854, 920167782
        %v1868 = vsel %vm1860, %v1851, %v1867
        %v1869 = vsel %vm1859, %v1866, %v1868
        %v1870 = vsel %vm1858, %v1848, %v1851
        %v1871 = vsel %vm1861, %v1857, 1326507024
        %v1872 = vsel %vm1860, %v1854, %v1871
        %v1873 = vsel %vm1859, %v1870, %v1872
        %v1874 = vshll.u32 %v1834, 8
        %v1875 = vmul.u32.u64.compose %v1874, %v1873
        %v1876 = vextract.low.u32 %v1875
        %v1877 = vextract.high.u32 %v1875
        %v1878 = vmul.u32.u64.compose %v1874, %v1869
        %v1879 = vextract.low.u32 %v1878
        %v1880 = vextract.high.u32 %v1878
        %v1881 = vmul.u32 %v1874, %v1865
        %v1882 = vadd.s32 %v1877, %v1879
        %vm1883 = vc.u32 %v1877, %v1879
        %v1884 = vadd.s32 %v1880, 1
        %v1885 = vsel %vm1883, %v1884, %v1880
        %v1886 = vadd.s32 %v1881, %v1885
        %v1887 = vadd.s32 %v1886, 536870912
        %v1888 = vshrl.u32 %v1887, 30
        %v1889 = vshll.u32 %v1888, 30
        %v1890 = vsub.s32 %v1886, %v1889
        %vm1891 = vcmp.lt.s32.totalorder %v1890, 0
        %v1892 = vsub.s32 0, %v1890
        %v1893 = vsel %vm1891, %v1892, %v1890
        %v1894 = vclz %v1893
        %v1895 = vsub.s32 %v1894, 2
        %vm1896 = vcmp.gt.s32.totalorder 0, %v1895
        %v1897 = vsel %vm1896, 0, %v1895
        %v1898 = vsub.s32 32, %v1897
        %v1899 = vshll.u32 %v1890, %v1897
        %v1900 = vshrl.u32 %v1882, %v1898
        %v1901 = vor.u32 %v1899, %v1900
        %v1902 = vsub.s32 4294967266, %v1897
        %v1903 = vadd.s32 %v1902, 127
        %v1904 = vshll.u32 %v1903, 23
        %v1905 = vor.u32 4788187, %v1904
        %v1906 = vand.u32 2147483647, %v1905
        %v1908 = vcvt.s32.f32 %v1901
        %v1909 = vmul.f32 %v1908, %v1906
        %v1910 = vxor.u32 %v1909, 2147483648
        %v1911 = vsel %vm1828, %v1910, %v1909
        %v1912 = vsub.s32 4, %v1888
        %v1913 = vsel %vm1828, %v1912, %v1888
        %v1914 = vsel %vm1827, %v1709, %v1911
        %v1915 = vsel %vm1827, 0, %v1913
        %v1916 = vcosq.f32.pop %v1914
        %v1917 = vsinq.f32.pop %v1914
        %vm1918 = vweird.f32 %v1709
        %v1919 = vadd.s32 %v1915, 3
        %v1920 = vand.u32 %v1919, 3
        %vm1921 = vcmp.lt.s32.totalorder %v1920, 2
        %vm1922 = vcmp.eq.s32.totalorder %v1920, 0
        %v1923 = vxor.u32 %v1917, 2147483648
        %v1924 = vsel %vm1922, %v1916, %v1923
        %vm1925 = vcmp.eq.s32.totalorder %v1920, 2
        %v1926 = vxor.u32 %v1916, 2147483648
        %v1927 = vsel %vm1925, %v1926, %v1917
        %v1928 = vsel %vm1921, %v1924, %v1927
        %v1929 = vsel %vm1918, nan, %v1928
        %v1930 = vand.u32 2147483647, %v1714
        %vm1931 = vcmp.le.f32.partialorder %v1930, 0.7853982
        %vm1932 = vcmp.lt.s32.totalorder %v1714, 0
        %v1933 = vand.u32 %v1714, 2139095040
        %v1934 = vshrl.u32 %v1933, 23
        %v1935 = vsub.s32 %v1934, 127
        %v1936 = vand.u32 2147483647, %v1714
        %v1937 = vand.u32 %v1936, 8388607
        %v1938 = vor.u32 %v1937, 8388608
        %v1939 = vsub.s32 0, %v1938
        %v1940 = vadd.s32 %v1935, 1
        %vm1941 = vcmp.gt.s32.totalorder %v1940, 0
        %v1942 = vsel %vm1941, %v1940, 0
        %v1943 = vshrl.u32 %v1942, 5
        %v1944 = vand.u32 %v1942, 31
        %v1945 = vsub.s32 32, %v1944
        %v1946 = vshrl.u32 683565275, %v1945
        %v1947 = vshll.u32 683565275, %v1944
        %v1948 = vshrl.u32 2475754826, %v1945
        %v1949 = vor.u32 %v1947, %v1948
        %v1950 = vshll.u32 2475754826, %v1944
        %v1951 = vshrl.u32 2131351028, %v1945
        %v1952 = vor.u32 %v1950, %v1951
        %v1953 = vshll.u32 2131351028, %v1944
        %v1954 = vshrl.u32 2102212464, %v1945
        %v1955 = vor.u32 %v1953, %v1954
        %v1956 = vshll.u32 2102212464, %v1944
        %v1957 = vshrl.u32 920167782, %v1945
        %v1958 = vor.u32 %v1956, %v1957
        %v1959 = vshll.u32 920167782, %v1944
        %v1960 = vshrl.u32 1326507024, %v1945
        %v1961 = vor.u32 %v1959, %v1960
        %vm1962 = vcmp.lt.s32.totalorder %v1943, 1
        %vm1963 = vcmp.lt.s32.totalorder %v1943, 2
        %vm1964 = vcmp.lt.s32.totalorder %v1943, 3
        %vm1965 = vcmp.lt.s32.totalorder %v1943, 4
        %v1966 = vsel %vm1962, %v1946, %v1949
        %v1967 = vsel %vm1965, %v1955, 2102212464
        %v1968 = vsel %vm1964, %v1952, %v1967
        %v1969 = vsel %vm1963, %v1966, %v1968
        %v1970 = vsel %vm1962, %v1949, %v1952
        %v1971 = vsel %vm1965, %v1958, 920167782
        %v1972 = vsel %vm1964, %v1955, %v1971
        %v1973 = vsel %vm1963, %v1970, %v1972
        %v1974 = vsel %vm1962, %v1952, %v1955
        %v1975 = vsel %vm1965, %v1961, 1326507024
        %v1976 = vsel %vm1964, %v1958, %v1975
        %v1977 = vsel %vm1963, %v1974, %v1976
        %v1978 = vshll.u32 %v1938, 8
        %v1979 = vmul.u32.u64.compose %v1978, %v1977
        %v1980 = vextract.low.u32 %v1979
        %v1981 = vextract.high.u32 %v1979
        %v1982 = vmul.u32.u64.compose %v1978, %v1973
        %v1983 = vextract.low.u32 %v1982
        %v1984 = vextract.high.u32 %v1982
        %v1985 = vmul.u32 %v1978, %v1969
        %v1986 = vadd.s32 %v1981, %v1983
        %vm1987 = vc.u32 %v1981, %v1983
        %v1988 = vadd.s32 %v1984, 1
        %v1989 = vsel %vm1987, %v1988, %v1984
        %v1990 = vadd.s32 %v1985, %v1989
        %v1991 = vadd.s32 %v1990, 536870912
        %v1992 = vshrl.u32 %v1991, 30
        %v1993 = vshll.u32 %v1992, 30
        %v1994 = vsub.s32 %v1990, %v1993
        %vm1995 = vcmp.lt.s32.totalorder %v1994, 0
        %v1996 = vsub.s32 0, %v1994
        %v1997 = vsel %vm1995, %v1996, %v1994
        %v1998 = vclz %v1997
        %v1999 = vsub.s32 %v1998, 2
        %vm2000 = vcmp.gt.s32.totalorder 0, %v1999
        %v2001 = vsel %vm2000, 0, %v1999
        %v2002 = vsub.s32 32, %v2001
        %v2003 = vshll.u32 %v1994, %v2001
        %v2004 = vshrl.u32 %v1986, %v2002
        %v2005 = vor.u32 %v2003, %v2004
        %v2006 = vsub.s32 4294967266, %v2001
        %v2007 = vadd.s32 %v2006, 127
        %v2008 = vshll.u32 %v2007, 23
        %v2009 = vor.u32 4788187, %v2008
        %v2010 = vand.u32 2147483647, %v2009
        %v2012 = vcvt.s32.f32 %v2005
        %v2013 = vmul.f32 %v2012, %v2010
        %v2014 = vxor.u32 %v2013, 2147483648
        %v2015 = vsel %vm1932, %v2014, %v2013
        %v2016 = vsub.s32 4, %v1992
        %v2017 = vsel %vm1932, %v2016, %v1992
        %v2018 = vsel %vm1931, %v1714, %v2015
        %v2019 = vsel %vm1931, 0, %v2017
        %v2020 = vcosq.f32.pop %v2018
        %v2021 = vsinq.f32.pop %v2018
        %vm2022 = vweird.f32 %v1714
        %v2023 = vadd.s32 %v2019, 3
        %v2024 = vand.u32 %v2023, 3
        %vm2025 = vcmp.lt.s32.totalorder %v2024, 2
        %vm2026 = vcmp.eq.s32.totalorder %v2024, 0
        %v2027 = vxor.u32 %v2021, 2147483648
        %v2028 = vsel %vm2026, %v2020, %v2027
        %vm2029 = vcmp.eq.s32.totalorder %v2024, 2
        %v2030 = vxor.u32 %v2020, 2147483648
        %v2031 = vsel %vm2029, %v2030, %v2021
        %v2032 = vsel %vm2025, %v2028, %v2031
        %v2033 = vsel %vm2022, nan, %v2032
        %v2034 = vand.u32 2147483647, %v1719
        %vm2035 = vcmp.le.f32.partialorder %v2034, 0.7853982
        %vm2036 = vcmp.lt.s32.totalorder %v1719, 0
        %v2037 = vand.u32 %v1719, 2139095040
        %v2038 = vshrl.u32 %v2037, 23
        %v2039 = vsub.s32 %v2038, 127
        %v2040 = vand.u32 2147483647, %v1719
        %v2041 = vand.u32 %v2040, 8388607
        %v2042 = vor.u32 %v2041, 8388608
        %v2043 = vsub.s32 0, %v2042
        %v2044 = vadd.s32 %v2039, 1
        %vm2045 = vcmp.gt.s32.totalorder %v2044, 0
        %v2046 = vsel %vm2045, %v2044, 0
        %v2047 = vshrl.u32 %v2046, 5
        %v2048 = vand.u32 %v2046, 31
        %v2049 = vsub.s32 32, %v2048
        %v2050 = vshrl.u32 683565275, %v2049
        %v2051 = vshll.u32 683565275, %v2048
        %v2052 = vshrl.u32 2475754826, %v2049
        %v2053 = vor.u32 %v2051, %v2052
        %v2054 = vshll.u32 2475754826, %v2048
        %v2055 = vshrl.u32 2131351028, %v2049
        %v2056 = vor.u32 %v2054, %v2055
        %v2057 = vshll.u32 2131351028, %v2048
        %v2058 = vshrl.u32 2102212464, %v2049
        %v2059 = vor.u32 %v2057, %v2058
        %v2060 = vshll.u32 2102212464, %v2048
        %v2061 = vshrl.u32 920167782, %v2049
        %v2062 = vor.u32 %v2060, %v2061
        %v2063 = vshll.u32 920167782, %v2048
        %v2064 = vshrl.u32 1326507024, %v2049
        %v2065 = vor.u32 %v2063, %v2064
        %vm2066 = vcmp.lt.s32.totalorder %v2047, 1
        %vm2067 = vcmp.lt.s32.totalorder %v2047, 2
        %vm2068 = vcmp.lt.s32.totalorder %v2047, 3
        %vm2069 = vcmp.lt.s32.totalorder %v2047, 4
        %v2070 = vsel %vm2066, %v2050, %v2053
        %v2071 = vsel %vm2069, %v2059, 2102212464
        %v2072 = vsel %vm2068, %v2056, %v2071
        %v2073 = vsel %vm2067, %v2070, %v2072
        %v2074 = vsel %vm2066, %v2053, %v2056
        %v2075 = vsel %vm2069, %v2062, 920167782
        %v2076 = vsel %vm2068, %v2059, %v2075
        %v2077 = vsel %vm2067, %v2074, %v2076
        %v2078 = vsel %vm2066, %v2056, %v2059
        %v2079 = vsel %vm2069, %v2065, 1326507024
        %v2080 = vsel %vm2068, %v2062, %v2079
        %v2081 = vsel %vm2067, %v2078, %v2080
        %v2082 = vshll.u32 %v2042, 8
        %v2083 = vmul.u32.u64.compose %v2082, %v2081
        %v2084 = vextract.low.u32 %v2083
        %v2085 = vextract.high.u32 %v2083
        %v2086 = vmul.u32.u64.compose %v2082, %v2077
        %v2087 = vextract.low.u32 %v2086
        %v2088 = vextract.high.u32 %v2086
        %v2089 = vmul.u32 %v2082, %v2073
        %v2090 = vadd.s32 %v2085, %v2087
        %vm2091 = vc.u32 %v2085, %v2087
        %v2092 = vadd.s32 %v2088, 1
        %v2093 = vsel %vm2091, %v2092, %v2088
        %v2094 = vadd.s32 %v2089, %v2093
        %v2095 = vadd.s32 %v2094, 536870912
        %v2096 = vshrl.u32 %v2095, 30
        %v2097 = vshll.u32 %v2096, 30
        %v2098 = vsub.s32 %v2094, %v2097
        %vm2099 = vcmp.lt.s32.totalorder %v2098, 0
        %v2100 = vsub.s32 0, %v2098
        %v2101 = vsel %vm2099, %v2100, %v2098
        %v2102 = vclz %v2101
        %v2103 = vsub.s32 %v2102, 2
        %vm2104 = vcmp.gt.s32.totalorder 0, %v2103
        %v2105 = vsel %vm2104, 0, %v2103
        %v2106 = vsub.s32 32, %v2105
        %v2107 = vshll.u32 %v2098, %v2105
        %v2108 = vshrl.u32 %v2090, %v2106
        %v2109 = vor.u32 %v2107, %v2108
        %v2110 = vsub.s32 4294967266, %v2105
        %v2111 = vadd.s32 %v2110, 127
        %v2112 = vshll.u32 %v2111, 23
        %v2113 = vor.u32 4788187, %v2112
        %v2114 = vand.u32 2147483647, %v2113
        %v2116 = vcvt.s32.f32 %v2109
        %v2117 = vmul.f32 %v2116, %v2114
        %v2118 = vxor.u32 %v2117, 2147483648
        %v2119 = vsel %vm2036, %v2118, %v2117
        %v2120 = vsub.s32 4, %v2096
        %v2121 = vsel %vm2036, %v2120, %v2096
        %v2122 = vsel %vm2035, %v1719, %v2119
        %v2123 = vsel %vm2035, 0, %v2121
        %v2124 = vcosq.f32.pop %v2122
        %v2125 = vsinq.f32.pop %v2122
        %vm2126 = vweird.f32 %v1719
        %v2127 = vadd.s32 %v2123, 3
        %v2128 = vand.u32 %v2127, 3
        %vm2129 = vcmp.lt.s32.totalorder %v2128, 2
        %vm2130 = vcmp.eq.s32.totalorder %v2128, 0
        %v2131 = vxor.u32 %v2125, 2147483648
        %v2132 = vsel %vm2130, %v2124, %v2131
        %vm2133 = vcmp.eq.s32.totalorder %v2128, 2
        %v2134 = vxor.u32 %v2124, 2147483648
        %v2135 = vsel %vm2133, %v2134, %v2125
        %v2136 = vsel %vm2129, %v2132, %v2135
        %v2137 = vsel %vm2126, nan, %v2136
        %v2138 = vld [vmem:[%s9] sm:$0x7]
        %v2139 = vld [vmem:[%s10] sm:$0x7]
        %2141 = vset.pattern.permute.xlu0 0
        %2142 = vperm.xlu0 %2141, %v2139
        %v2143 = vpop.permute.xlu0 %2142
        %v2146 = vsel %vm1083, %v2138, 0
        %2148 = vmatprep.subr.mxu0 0.0
        %2149 = vmatpush1.msra.mxu0 %v1825
        %2150 = vmatprep.subr.mxu0 0.0
        %2151 = vmatpush1.msra.mxu0 %v1929
        %2152 = vmatprep.subr.mxu0 0.0
        %2153 = vmatpush1.msra.mxu0 %v2033
        %2154 = vmatprep.subr.mxu0 0.0
        %2155 = vmatpush1.msra.mxu0 %v2137
        %2156 = vmatprep.subr.mxu0 0.0
        %2157 = vmatpush1.msra.mxu0 0.0
        %2158 = vmatprep.subr.mxu0 0.0
        %2159 = vmatpush1.msra.mxu0 0.0
        %2160 = vmatprep.subr.mxu0 0.0
        %2161 = vmatpush1.msra.mxu0 0.0
        %2162 = vmatprep.subr.mxu0 0.0
        %2163 = vmatpush1.msra.mxu0 0.0
        %2164 = vmatprep.subr.mxu0 0.0
        %2165 = vmatpush1.msra.mxu0 0.0
        %2166 = vmatprep.subr.mxu0 0.0
        %2167 = vmatpush1.msra.mxu0 0.0
        %2168 = vmatprep.subr.mxu0 0.0
        %2169 = vmatpush1.msra.mxu0 0.0
        %2170 = vmatprep.subr.mxu0 0.0
        %2171 = vmatpush1.msra.mxu0 0.0
        %2172 = vmatprep.subr.mxu0 0.0
        %2173 = vmatpush1.msra.mxu0 0.0
        %2174 = vmatprep.subr.mxu0 0.0
        %2175 = vmatpush1.msra.mxu0 0.0
        %2176 = vmatprep.subr.mxu0 0.0
        %2177 = vmatpush1.msra.mxu0 0.0
        %2178 = vmatprep.subr.mxu0 0.0
        %2179 = vmatpush1.msra.mxu0 0.0
        %2180 = vmatprep.subr.mxu0 0.0
        %2181 = vmatpush1.msra.mxu0 0.0
        %2182 = vmatprep.subr.mxu0 0.0
        %2183 = vmatpush1.msra.mxu0 0.0
        %2184 = vmatprep.subr.mxu0 0.0
        %2185 = vmatpush1.msra.mxu0 0.0
        %2186 = vmatprep.subr.mxu0 0.0
        %2187 = vmatpush1.msra.mxu0 0.0
        %2188 = vmatprep.subr.mxu0 0.0
        %2189 = vmatpush1.msra.mxu0 0.0
        %2190 = vmatprep.subr.mxu0 0.0
        %2191 = vmatpush1.msra.mxu0 0.0
        %2192 = vmatprep.subr.mxu0 0.0
        %2193 = vmatpush1.msra.mxu0 0.0
        %2194 = vmatprep.subr.mxu0 0.0
        %2195 = vmatpush1.msra.mxu0 0.0
        %2196 = vmatprep.subr.mxu0 0.0
        %2197 = vmatpush1.msra.mxu0 0.0
        %2198 = vmatprep.subr.mxu0 0.0
        %2199 = vmatpush1.msra.mxu0 0.0
        %2200 = vmatprep.subr.mxu0 0.0
        %2201 = vmatpush1.msra.mxu0 0.0
        %2202 = vmatprep.subr.mxu0 0.0
        %2203 = vmatpush1.msra.mxu0 0.0
        %2204 = vmatprep.subr.mxu0 0.0
        %2205 = vmatpush1.msra.mxu0 0.0
        %2206 = vmatprep.subr.mxu0 0.0
        %2207 = vmatpush1.msra.mxu0 0.0
        %2208 = vmatprep.subr.mxu0 0.0
        %2209 = vmatpush1.msra.mxu0 0.0
        %2210 = vmatprep.subr.mxu0 0.0
        %2211 = vmatpush1.msra.mxu0 0.0
        %2212 = vmatprep.mubr.f32.mxu0 0.0
        %2213 = vmatmul.mubr.f32.gmra.mrb[0].mxu0 %v2146
        %v2214 = vpop.f32.mrb[0].mxu0
        %v2215 = vadd.f32 %v2143, %v2214
        %v2216 = vpop.f32.mrb[0].mxu0
        %2217 = vdwg.mxu0
        %2218 = vst [vmem:[%s390] sm:$0x7] %v2215
        %s2219 = sand.u32 %s274, 1
        %s2220 = scalar_lea.sflag [#allocation3], %s2219
        %s2221 = sand.u32 %s274, 1
        %s2222 = smul.addr %s2221, 4
        %s2223 = scalar_lea.vmem [#allocation2], %s2222
        // Predicated region
        $region65: #{tpu_custom_call.1} parent=63 // pred_check
          %p2224 = pneg %p284
        $region66: #{tpu_custom_call.1} parent=63 // pred_check_branch
          %2226 = sbr.rel (%p2224) target = $region68
        $region67: #{tpu_custom_call.1} parent=63 // pred_region
          %s2228 = ssub.s32 64, 64
          %2229 = vsyncadd %s2220, %s2228
          %s2230 = smul.addr %s25, 64
          %s2231 = scalar_lea.hbm %s11, %s2230
          %s2233 = sshll.u32 %s2223, 4
          %s2234 = int_to_ptr.vmem [resolvable:$true] %s2233
          %2236 = dma.vmem_to_hbm [thread:$0]  %s2234, 64, %s2231, %s2220
        $region68: #{tpu_custom_call.1} parent=63 // pred_fallthru
          _
      $region64: #{tpu_custom_call.1} parent=5 // pred_fallthru
        _
      %p2237 = scmp.le.s32.totalorder 2, %s20
      // Predicated region
      $region69: #{tpu_custom_call.1} parent=5 // pred_check
        %p2238 = pneg %p2237
      $region70: #{tpu_custom_call.1} parent=5 // pred_check_branch
        %2240 = sbr.rel (%p2238) target = $region72
      $region71: #{tpu_custom_call.1} parent=5 // pred_region
        %s2241 = ssub.s32 %s20, 2
        // Predicated region
        $region73: #{tpu_custom_call.1} parent=71 // pred_check
          %p2242 = pneg %p290
        $region74: #{tpu_custom_call.1} parent=71 // pred_check_branch
          %2244 = sbr.rel (%p2242) target = $region76
        $region75: #{tpu_custom_call.1} parent=71 // pred_region
          %s2245 = sand.u32 %s275, 1
          %s2246 = scalar_lea.sflag [#allocation3], %s2245
          %s2247 = sand.u32 %s275, 1
          %s2248 = smul.addr %s2247, 4
          %s2249 = scalar_lea.vmem [#allocation2], %s2248
          %2250 = dma.done %s2246, 64
        $region76: #{tpu_custom_call.1} parent=71 // pred_fallthru
          _
      $region72: #{tpu_custom_call.1} parent=5 // pred_fallthru
        _
    $region6: #{tpu_custom_call.1} parent=1 // loop_footer
      %s24 = sadd.s32 1, %s20
    $region7: #{tpu_custom_call.1} parent=1 // loop_footer_branch
      %19 = sbr.rel target = $region3
    $region8: #{tpu_custom_call.1} parent=1 // loop_exit
      _
    %2251 = vsyncpa [#allocation3], 1
    %s2252 = scalar_lea.sflag [#allocation3], 1
    %2253 = vsyncpa %s2252, 1

</llo_original>
